<compile_context>
chip_gen: v5e
topology: v5e:2x2
jax: 0.10.0
libtpu: 0.0.40
codegen_flags: <defaults>
</compile_context>

<pallas_src>
import functools
import math

import jax
import jax.numpy as jnp
import numpy as np
from jax import lax
from jax.experimental import pallas as pl
from jax.experimental.pallas import tpu as pltpu

# ---------------------------------------------------------------------------
# Static configuration (mirrors IASSDHead.__init__ arguments)
# ---------------------------------------------------------------------------
IN_CHANNELS = 32
MID_CHANNELS = 64
NUM_CLASSES = 3
BIN_SIZE = 12                           # PointResBinOriCoder angle bins
CODE_SIZE = 6 + 2 * BIN_SIZE            # 30
BIN_INTER = 2.0 * math.pi / BIN_SIZE
MEAN_SIZE = np.array([[3.9, 1.6, 1.56],
                      [0.8, 0.6, 1.73],
                      [1.76, 0.6, 1.73]], dtype=np.float32)
BN_EPS = 1e-5

CLS_ROW0 = 32                           # cls rows start on a sublane-aligned row
OUT_ROWS = 40                           # fused layer-2 output rows (mult. of 8)
K_AUG = IN_CHANNELS + 8                 # layer-1 K after bias fold (mult. of 8)
# Lane-dense tile cap.  The narrow point-major output blocks (30/3/7 channels)
# are lane-padded to 128 in VMEM, so very large tiles get VMEM-expensive; 1024
# points/step keeps all generations well inside their scoped-VMEM defaults.
MAX_TN = 1024

assert MEAN_SIZE.shape == (3, 3) and MEAN_SIZE.min() > 0
assert NUM_CLASSES == 3                 # kernel's where-chains assume 3 classes


# ---------------------------------------------------------------------------
# Pallas kernel: fused heads + vectorized argmax/decode, point-major outputs
# ---------------------------------------------------------------------------
def _iassd_head_kernel(x_ref, pts_ref, w1_ref, w2_ref, b2_ref, *out_refs,
                       with_box):
    if with_box:
        box_ref, cls_ref, pbp_ref = out_refs
    else:
        box_ref = None
        cls_ref, pbp_ref = out_refs

    x = x_ref[0].astype(jnp.bfloat16)               # [C_in, TN]  cast in-kernel
    n = x.shape[-1]

    # ---- fused MLP heads; conv-1 bias folded into matmul-1 via ones rows ----
    x_aug = jnp.concatenate(
        [x, jnp.ones((K_AUG - IN_CHANNELS, n), jnp.bfloat16)], axis=0)   # [40, TN]
    h = jnp.dot(w1_ref[...], x_aug, preferred_element_type=jnp.float32)  # [128, TN]
    h = jnp.maximum(h, 0.0)                         # ReLU (bias already in matmul)
    out = jnp.dot(w2_ref[...], h.astype(jnp.bfloat16),
                  preferred_element_type=jnp.float32) + b2_ref[...]      # [40, TN]

    # ---- point-major raw logits: one in-kernel XLU transpose, bf16 stores ----
    out_t = jnp.transpose(out)                      # [TN, 40]
    if with_box:
        box_ref[0] = out_t[:, :CODE_SIZE].astype(jnp.bfloat16)
    cls_ref[0] = out_t[:, CLS_ROW0:CLS_ROW0 + NUM_CLASSES].astype(jnp.bfloat16)

    # ---- class argmax (first-max tie-break); int32 iota shared with decode ----
    cls3 = out[CLS_ROW0:CLS_ROW0 + NUM_CLASSES, :]                        # [3, TN]
    iota3 = lax.broadcasted_iota(jnp.int32, (3, n), 0)  # NUM_CLASSES == 3 == #dims
    cmax = jnp.max(cls3, axis=0, keepdims=True)
    pred = jnp.min(jnp.where(cls3 >= cmax, iota3, NUM_CLASSES),
                   axis=0, keepdims=True)                                 # [1, TN] i32

    # ---- anchor lookup from Python-float literals (no captured array consts) ----
    ms = [[float(v) for v in row] for row in np.asarray(MEAN_SIZE)]
    eq0, eq1 = pred == 0, pred == 1
    sel = lambda v0, v1, v2: jnp.where(eq0, v0, jnp.where(eq1, v1, v2))
    dxa = sel(ms[0][0], ms[1][0], ms[2][0])                               # [1, TN]
    dya = sel(ms[0][1], ms[1][1], ms[2][1])
    dza = sel(ms[0][2], ms[1][2], ms[2][2])
    diag = sel(*[math.hypot(ms[k][0], ms[k][1]) for k in range(3)])

    # ---- PointResBinOri decode on packed [3, TN] slabs ----
    pts = jnp.transpose(pts_ref[0])                 # [3, TN]  (block is [TN, 3])
    scale3 = jnp.where(iota3 == 2, dza, diag)       # [diag, diag, dza]
    anchor3 = jnp.where(iota3 == 0, dxa, jnp.where(iota3 == 1, dya, dza))
    ctr3 = out[0:3, :] * scale3 + pts
    dims3 = jnp.exp(out[3:6, :]) * anchor3          # one EUP exp over [3, TN]

    # ---- angle-bin argmax + residual gather over [12, TN] ----
    bin_cls = out[6:6 + BIN_SIZE, :]
    bin_res = out[6 + BIN_SIZE:6 + 2 * BIN_SIZE, :]
    biota = lax.broadcasted_iota(jnp.int32, (BIN_SIZE, n), 0)
    bmax = jnp.max(bin_cls, axis=0, keepdims=True)
    bin_id = jnp.min(jnp.where(bin_cls >= bmax, biota, BIN_SIZE),
                     axis=0, keepdims=True)                               # [1, TN] i32
    res = jnp.sum(jnp.where(biota == bin_id, bin_res, 0.0),
                  axis=0, keepdims=True)
    rg = bin_id.astype(jnp.float32) * BIN_INTER + res - math.pi

    # ---- single full-tile point-major store of decoded boxes ----
    pbp8 = jnp.concatenate([ctr3, dims3, rg, jnp.zeros_like(rg)], axis=0)  # [8, TN]
    pbp_ref[0] = jnp.transpose(pbp8)[:, :7]


# ---------------------------------------------------------------------------
# Wrapper
# ---------------------------------------------------------------------------
def _pick_tn(n_pad, batch):
    """Lane-dense tile; split so B==1 still yields >=2 grid steps (v7x cores)."""
    tn = min(n_pad, MAX_TN)
    while n_pad % tn:
        tn -= 128
    if batch * (n_pad // tn) < 2 and tn % 256 == 0:
        tn //= 2
    return tn


@functools.partial(jax.jit, static_argnames=("with_box_preds",))
def iassd_head_forward(ctr_feats, ctr_preds, fused, with_box_preds=True):
    """Eval-mode IASSDHead.forward.

    ctr_feats: [B, C_in, N] f32 (NCW), ctr_preds: [B, N, 3] f32 point xyz.
    Returns (ctr_box_preds [B,N,30] bf16 | None, pt_cls_preds [B,N,3] bf16,
             pt_box_preds [B,N,7] f32, targets=None).
    """
    B, c_in, N = ctr_feats.shape
    assert c_in == IN_CHANNELS
    n_pad = ((N + 127) // 128) * 128
    x, pts = ctr_feats, ctr_preds
    if n_pad != N:
        # Padded tail columns decode bias-only values (finite) and are sliced off.
        x = jnp.pad(x, ((0, 0), (0, 0), (0, n_pad - N)))
        pts = jnp.pad(pts, ((0, 0), (0, n_pad - N), (0, 0)))

    tn = _pick_tn(n_pad, B)
    grid = (B, n_pad // tn)

    kernel = functools.partial(_iassd_head_kernel, with_box=with_box_preds)
    w_spec = lambda a: pl.BlockSpec(a.shape, lambda b, j: (0,) * a.ndim)

    out_shapes, out_specs = [], []
    if with_box_preds:
        out_shapes.append(jax.ShapeDtypeStruct((B, n_pad, CODE_SIZE), jnp.bfloat16))
        out_specs.append(pl.BlockSpec((1, tn, CODE_SIZE), lambda b, j: (b, j, 0)))
    out_shapes += [jax.ShapeDtypeStruct((B, n_pad, NUM_CLASSES), jnp.bfloat16),
                   jax.ShapeDtypeStruct((B, n_pad, 7), jnp.float32)]
    out_specs += [pl.BlockSpec((1, tn, NUM_CLASSES), lambda b, j: (b, j, 0)),
                  pl.BlockSpec((1, tn, 7), lambda b, j: (b, j, 0))]

    mid2 = 2 * MID_CHANNELS
    per_pt_bytes = (c_in * 4 + 3 * 4 + NUM_CLASSES * 2 + 7 * 4
                    + (CODE_SIZE * 2 if with_box_preds else 0))
    cost = pl.CostEstimate(
        flops=2 * B * n_pad * mid2 * (K_AUG + OUT_ROWS),
        transcendentals=3 * B * n_pad,
        bytes_accessed=B * n_pad * per_pt_bytes + 24 * 1024)

    outs = pl.pallas_call(
        kernel,
        out_shape=tuple(out_shapes),
        grid_spec=pltpu.PrefetchScalarGridSpec(
            num_scalar_prefetch=0,
            grid=grid,
            in_specs=[pl.BlockSpec((1, c_in, tn), lambda b, j: (b, 0, j)),
                      pl.BlockSpec((1, tn, 3), lambda b, j: (b, j, 0)),
                      w_spec(fused["w1"]), w_spec(fused["w2"]), w_spec(fused["b2"])],
            out_specs=tuple(out_specs)),
        compiler_params=pltpu.CompilerParams(
            dimension_semantics=("parallel", "parallel")),
        cost_estimate=cost,
    )(x, pts, fused["w1"], fused["w2"], fused["b2"])

    if with_box_preds:
        box, cls, pbp = outs
    else:
        box = None
        cls, pbp = outs
    if n_pad != N:
        box = None if box is None else box[:, :N]
        cls, pbp = cls[:, :N], pbp[:, :N]
    return box, cls, pbp, None


# ---------------------------------------------------------------------------
# Parameter construction (BN eval-mode + conv-1 bias folded at build time)
# ---------------------------------------------------------------------------
def make_params(key):
    ks = jax.random.split(key, 10)

    def fold_bn(w, gamma, beta, mean, var):
        scale = gamma / jnp.sqrt(var + BN_EPS)
        return w * scale[:, None], beta - mean * scale

    w1b_raw = jax.random.normal(ks[0], (MID_CHANNELS, IN_CHANNELS), jnp.float32) * 0.05
    g_b = 1.0 + 0.1 * jax.random.normal(ks[1], (MID_CHANNELS,), jnp.float32)
    bt_b = 0.1 * jax.random.normal(ks[2], (MID_CHANNELS,), jnp.float32)
    w1b, b1b = fold_bn(w1b_raw, g_b, bt_b, jnp.zeros(MID_CHANNELS), jnp.ones(MID_CHANNELS))
    w2b = jax.random.normal(ks[3], (CODE_SIZE, MID_CHANNELS), jnp.float32) * 0.05
    b2b = 0.01 * jax.random.normal(ks[4], (CODE_SIZE,), jnp.float32)

    w1c_raw = jax.random.normal(ks[5], (MID_CHANNELS, IN_CHANNELS), jnp.float32) * 0.05
    g_c = 1.0 + 0.1 * jax.random.normal(ks[6], (MID_CHANNELS,), jnp.float32)
    bt_c = 0.1 * jax.random.normal(ks[7], (MID_CHANNELS,), jnp.float32)
    w1c, b1c = fold_bn(w1c_raw, g_c, bt_c, jnp.zeros(MID_CHANNELS), jnp.ones(MID_CHANNELS))
    w2c = jax.random.normal(ks[8], (NUM_CLASSES, MID_CHANNELS), jnp.float32) * 0.05
    b2c = 0.01 * jax.random.normal(ks[9], (NUM_CLASSES,), jnp.float32)

    return dict(w1b=w1b, b1b=b1b, w2b=w2b, b2b=b2b,
                w1c=w1c, b1c=b1c, w2c=w2c, b2c=b2c)


def fuse_params(p):
    """Fuse both heads + conv-1 bias into one weight per layer (built once)."""
    w1 = jnp.concatenate([p["w1b"], p["w1c"]], axis=0)              # [128, 32]
    b1 = jnp.concatenate([p["b1b"], p["b1c"]], axis=0)              # [128]
    w1_aug = jnp.zeros((2 * MID_CHANNELS, K_AUG), jnp.float32)      # [128, 40]
    w1_aug = w1_aug.at[:, :IN_CHANNELS].set(w1)
    w1_aug = w1_aug.at[:, IN_CHANNELS].set(b1)    # bias column; cols 33..39 stay 0

    w2 = jnp.zeros((OUT_ROWS, 2 * MID_CHANNELS), jnp.float32)       # [40, 128]
    w2 = w2.at[:CODE_SIZE, :MID_CHANNELS].set(p["w2b"])
    w2 = w2.at[CLS_ROW0:CLS_ROW0 + NUM_CLASSES, MID_CHANNELS:].set(p["w2c"])
    b2 = jnp.zeros((OUT_ROWS, 1), jnp.float32)
    b2 = b2.at[:CODE_SIZE, 0].set(p["b2b"])
    b2 = b2.at[CLS_ROW0:CLS_ROW0 + NUM_CLASSES, 0].set(p["b2c"])

    return dict(w1=w1_aug.astype(jnp.bfloat16), w2=w2.astype(jnp.bfloat16), b2=b2)


# ---------------------------------------------------------------------------
# Pure-JAX references
# ---------------------------------------------------------------------------
def _decode_ref(box, cls_logits, points):
    pred_cls = jnp.argmax(cls_logits, axis=-1)
    anchor = jnp.asarray(MEAN_SIZE)[pred_cls]
    dxa, dya, dza = anchor[..., 0], anchor[..., 1], anchor[..., 2]
    diag = jnp.sqrt(dxa ** 2 + dya ** 2)
    xg = box[..., 0] * diag + points[..., 0]
    yg = box[..., 1] * diag + points[..., 1]
    zg = box[..., 2] * dza + points[..., 2]
    dxg = jnp.exp(box[..., 3]) * dxa
    dyg = jnp.exp(box[..., 4]) * dya
    dzg = jnp.exp(box[..., 5]) * dza
    bin_id = jnp.argmax(box[..., 6:6 + BIN_SIZE], axis=-1)
    bin_res = jnp.take_along_axis(box[..., 6 + BIN_SIZE:6 + 2 * BIN_SIZE],
                                  bin_id[..., None], axis=-1)[..., 0]
    rg = bin_id.astype(jnp.float32) * BIN_INTER + bin_res - math.pi
    return jnp.stack([xg, yg, zg, dxg, dyg, dzg, rg], axis=-1)


def reference_forward(ctr_feats, ctr_preds, p):
    """Module-faithful eval forward: separate heads, f32 bias adds."""
    xb = ctr_feats.astype(jnp.bfloat16)

    def head(w1, b1, w2, b2):
        h = jnp.einsum("oc,bcn->bon", w1.astype(jnp.bfloat16), xb,
                       preferred_element_type=jnp.float32)
        h = jnp.maximum(h + b1[None, :, None], 0.0)
        o = jnp.einsum("oc,bcn->bon", w2.astype(jnp.bfloat16), h.astype(jnp.bfloat16),
                       preferred_element_type=jnp.float32) + b2[None, :, None]
        return jnp.transpose(o, (0, 2, 1))

    box = head(p["w1b"], p["b1b"], p["w2b"], p["b2b"])   # [B, N, 30]
    cls = head(p["w1c"], p["b1c"], p["w2c"], p["b2c"])   # [B, N, 3]
    return box, cls, _decode_ref(box, cls, ctr_preds)


def reference_forward_fused(ctr_feats, ctr_preds, fused):
    """Kernel-equivalent numerics (same fused, bias-folded bf16 params) so the
    argmax / bin-gather discontinuities in the decode see identical logits."""
    B, _, N = ctr_feats.shape
    x_aug = jnp.concatenate(
        [ctr_feats.astype(jnp.bfloat16),
         jnp.ones((B, K_AUG - IN_CHANNELS, N), jnp.bfloat16)], axis=1)
    h = jnp.einsum("oc,bcn->bon", fused["w1"], x_aug,
                   preferred_element_type=jnp.float32)
    h = jnp.maximum(h, 0.0)
    out = jnp.einsum("oc,bcn->bon", fused["w2"], h.astype(jnp.bfloat16),
                     preferred_element_type=jnp.float32) + fused["b2"][None]
    out = jnp.transpose(out, (0, 2, 1))
    box = out[..., :CODE_SIZE]
    cls = out[..., CLS_ROW0:CLS_ROW0 + NUM_CLASSES]
    return box, cls, _decode_ref(box, cls, ctr_preds)


if __name__ == "__main__":
    key = jax.random.PRNGKey(0)
    k_feat, k_pts, k_par = jax.random.split(key, 3)

    B, N = 2, 256
    ctr_feats = jax.random.normal(k_feat, (B, IN_CHANNELS, N), jnp.float32)   # NCW
    ctr_preds = jax.random.uniform(k_pts, (B, N, 3), jnp.float32,
                                   minval=-20.0, maxval=20.0)                 # point xyz
    params = make_params(k_par)
    fused = fuse_params(params)

    box_p, cls_p, pbp_p, targets = iassd_head_forward(
        ctr_feats, ctr_preds, fused, with_box_preds=True)
    jax.block_until_ready((box_p, cls_p, pbp_p))

    # Module-faithful reference for the continuous logits.
    box_r, cls_r, pbp_r = reference_forward(ctr_feats, ctr_preds, params)
    # Kernel-equivalent reference for the decode (argmax tie-break is only
    # guaranteed to match when the logits are numerically identical).
    _, _, pbp_f = reference_forward_fused(ctr_feats, ctr_preds, fused)

    np.testing.assert_allclose(np.asarray(box_p.astype(jnp.float32)),
                               np.asarray(box_r), rtol=2e-2, atol=2e-2)
    np.testing.assert_allclose(np.asarray(cls_p.astype(jnp.float32)),
                               np.asarray(cls_r), rtol=2e-2, atol=2e-2)
    np.testing.assert_allclose(np.asarray(pbp_p), np.asarray(pbp_f),
                               rtol=2e-2, atol=2e-2)
    # Bulk agreement with the module-faithful decode (rare argmax ties excluded).
    close = np.isclose(np.asarray(pbp_p), np.asarray(pbp_r), rtol=2e-2, atol=2e-2)
    assert close.mean() > 0.97

    assert box_p.shape == (B, N, CODE_SIZE) and box_p.dtype == jnp.bfloat16
    assert cls_p.shape == (B, N, NUM_CLASSES) and cls_p.dtype == jnp.bfloat16
    assert pbp_p.shape == (B, N, 7) and pbp_p.dtype == jnp.float32
    assert targets is None
    print("KERNEL_OK")
</pallas_src>

<mosaic_0001>
module attributes {stable_mosaic.version = 11 : i64} {
  func.func @_iassd_head_kernel(%arg0: i32, %arg1: i32, %arg2: memref<1x32x256xf32, #tpu.memory_space<vmem>>, %arg3: memref<1x256x3xf32, #tpu.memory_space<vmem>>, %arg4: memref<128x40xbf16, #tpu.memory_space<vmem>>, %arg5: memref<40x128xbf16, #tpu.memory_space<vmem>>, %arg6: memref<40x1xf32, #tpu.memory_space<vmem>>, %arg7: memref<1x256x30xbf16, #tpu.memory_space<vmem>>, %arg8: memref<1x256x3xbf16, #tpu.memory_space<vmem>>, %arg9: memref<1x256x7xf32, #tpu.memory_space<vmem>>) attributes {dimension_semantics = [#tpu.dimension_semantics<parallel>, #tpu.dimension_semantics<parallel>], iteration_bounds = array<i64: 2, 1>, scalar_prefetch = 0 : i64, scratch_operands = 0 : i64, tpu.core_type = #tpu.core_type<tc>, window_params = [{transform_indices = @transform_0, window_bounds = array<i64: 1, 32, 256>}, {transform_indices = @transform_1, window_bounds = array<i64: 1, 256, 3>}, {pipeline_mode = #tpu.pipeline_mode<synchronous>, transform_indices = @transform_2, window_bounds = array<i64: 128, 40>}, {pipeline_mode = #tpu.pipeline_mode<synchronous>, transform_indices = @transform_3, window_bounds = array<i64: 40, 128>}, {pipeline_mode = #tpu.pipeline_mode<synchronous>, transform_indices = @transform_4, window_bounds = array<i64: 40, 1>}, {transform_indices = @transform_5, window_bounds = array<i64: 1, 256, 30>}, {transform_indices = @transform_6, window_bounds = array<i64: 1, 256, 3>}, {transform_indices = @transform_7, window_bounds = array<i64: 1, 256, 7>}]} {
    %c0 = arith.constant 0 : index
    %c0_0 = arith.constant 0 : index
    %c0_1 = arith.constant 0 : index
    %0 = vector.load %arg2[%c0, %c0_0, %c0_1] : memref<1x32x256xf32, #tpu.memory_space<vmem>>, vector<1x32x256xf32>
    %1 = vector.shape_cast %0 : vector<1x32x256xf32> to vector<32x256xf32>
    %2 = arith.truncf %1 : vector<32x256xf32> to vector<32x256xbf16>
    %cst = arith.constant 1.000000e+00 : bf16
    %3 = vector.broadcast %cst : bf16 to vector<8x256xbf16>
    %4 = tpu.concatenate %2, %3 in 0 : vector<32x256xbf16>, vector<8x256xbf16> -> vector<40x256xbf16>
    %c0_2 = arith.constant 0 : index
    %c0_3 = arith.constant 0 : index
    %5 = vector.load %arg4[%c0_2, %c0_3] : memref<128x40xbf16, #tpu.memory_space<vmem>>, vector<128x40xbf16>
    %cst_4 = arith.constant dense<0.000000e+00> : vector<128x256xf32>
    %6 = tpu.matmul %5, %4, %cst_4 {dimension_numbers = #tpu.dot_dimension_numbers<[1], [0], [0], [1], [0, 0, 1, 1], [], []>} : vector<128x40xbf16>, vector<40x256xbf16>, vector<128x256xf32> -> vector<128x256xf32>
    %cst_5 = arith.constant 0.000000e+00 : f32
    %7 = vector.broadcast %cst_5 : f32 to vector<128x256xf32>
    %8 = arith.maximumf %6, %7 : vector<128x256xf32>
    %c0_6 = arith.constant 0 : index
    %c0_7 = arith.constant 0 : index
    %9 = vector.load %arg5[%c0_6, %c0_7] : memref<40x128xbf16, #tpu.memory_space<vmem>>, vector<40x128xbf16>
    %10 = arith.truncf %8 : vector<128x256xf32> to vector<128x256xbf16>
    %cst_8 = arith.constant dense<0.000000e+00> : vector<40x256xf32>
    %11 = tpu.matmul %9, %10, %cst_8 {dimension_numbers = #tpu.dot_dimension_numbers<[1], [0], [0], [1], [0, 0, 1, 1], [], []>} : vector<40x128xbf16>, vector<128x256xbf16>, vector<40x256xf32> -> vector<40x256xf32>
    %c0_9 = arith.constant 0 : index
    %c0_10 = arith.constant 0 : index
    %12 = vector.load %arg6[%c0_9, %c0_10] : memref<40x1xf32, #tpu.memory_space<vmem>>, vector<40x1xf32>
    %13 = vector.broadcast %12 : vector<40x1xf32> to vector<40x256xf32>
    %14 = arith.addf %11, %13 : vector<40x256xf32>
    %15 = tpu.transpose %14, [1, 0] : vector<40x256xf32> -> vector<256x40xf32>
    %16 = vector.extract_strided_slice %15 {offsets = [0, 0], sizes = [256, 30], strides = [1, 1]} : vector<256x40xf32> to vector<256x30xf32>
    %17 = arith.truncf %16 : vector<256x30xf32> to vector<256x30xbf16>
    %c0_11 = arith.constant 0 : index
    %c0_12 = arith.constant 0 : index
    %c0_13 = arith.constant 0 : index
    %18 = vector.load %arg7[%c0_11, %c0_12, %c0_13] : memref<1x256x30xbf16, #tpu.memory_space<vmem>>, vector<1x256x30xbf16>
    %19 = vector.shape_cast %18 : vector<1x256x30xbf16> to vector<256x30xbf16>
    %20 = vector.shape_cast %17 : vector<256x30xbf16> to vector<1x256x30xbf16>
    tpu.vector_store %arg7[%c0_11, %c0_12, %c0_13], %20 {strides = array<i32>} : memref<1x256x30xbf16, #tpu.memory_space<vmem>>, vector<1x256x30xbf16>,
    %21 = vector.extract_strided_slice %15 {offsets = [0, 32], sizes = [256, 3], strides = [1, 1]} : vector<256x40xf32> to vector<256x3xf32>
    %22 = arith.truncf %21 : vector<256x3xf32> to vector<256x3xbf16>
    %c0_14 = arith.constant 0 : index
    %c0_15 = arith.constant 0 : index
    %c0_16 = arith.constant 0 : index
    %23 = vector.load %arg8[%c0_14, %c0_15, %c0_16] : memref<1x256x3xbf16, #tpu.memory_space<vmem>>, vector<1x256x3xbf16>
    %24 = vector.shape_cast %23 : vector<1x256x3xbf16> to vector<256x3xbf16>
    %25 = vector.shape_cast %22 : vector<256x3xbf16> to vector<1x256x3xbf16>
    tpu.vector_store %arg8[%c0_14, %c0_15, %c0_16], %25 {strides = array<i32>} : memref<1x256x3xbf16, #tpu.memory_space<vmem>>, vector<1x256x3xbf16>,
    %26 = vector.extract_strided_slice %14 {offsets = [32, 0], sizes = [3, 256], strides = [1, 1]} : vector<40x256xf32> to vector<3x256xf32>
    %27 = tpu.iota {dimensions = array<i32: 0>} : vector<3x256xi32>
    %cst_17 = arith.constant dense<0xFF800000> : vector<256xf32>
    %28 = vector.multi_reduction <maximumf>, %26, %cst_17 [0] : vector<3x256xf32> to vector<256xf32>
    %29 = vector.shape_cast %28 : vector<256xf32> to vector<1x256xf32>
    %30 = vector.broadcast %29 : vector<1x256xf32> to vector<3x256xf32>
    %31 = arith.cmpf oge, %26, %30 : vector<3x256xf32>
    %c3_i32 = arith.constant 3 : i32
    %32 = vector.broadcast %c3_i32 : i32 to vector<3x256xi32>
    %33 = arith.select %31, %27, %32 : vector<3x256xi1>, vector<3x256xi32>
    %cst_18 = arith.constant dense<2147483647> : vector<256xi32>
    %34 = vector.multi_reduction <minsi>, %33, %cst_18 [0] : vector<3x256xi32> to vector<256xi32>
    %35 = vector.shape_cast %34 : vector<256xi32> to vector<1x256xi32>
    %c0_i32 = arith.constant 0 : i32
    %36 = vector.broadcast %c0_i32 : i32 to vector<1x256xi32>
    %37 = arith.cmpi eq, %35, %36 : vector<1x256xi32>
    %c1_i32 = arith.constant 1 : i32
    %38 = vector.broadcast %c1_i32 : i32 to vector<1x256xi32>
    %39 = arith.cmpi eq, %35, %38 : vector<1x256xi32>
    %cst_19 = arith.constant 8.000000e-01 : f32
    %cst_20 = arith.constant 1.760000e+00 : f32
    %40 = vector.broadcast %cst_19 : f32 to vector<1x256xf32>
    %41 = vector.broadcast %cst_20 : f32 to vector<1x256xf32>
    %42 = arith.select %39, %40, %41 : vector<1x256xi1>, vector<1x256xf32>
    %cst_21 = arith.constant 3.900000e+00 : f32
    %43 = vector.broadcast %cst_21 : f32 to vector<1x256xf32>
    %44 = arith.select %37, %43, %42 : vector<1x256xi1>, vector<1x256xf32>
    %cst_22 = arith.constant 6.000000e-01 : f32
    %cst_23 = arith.constant 6.000000e-01 : f32
    %45 = vector.broadcast %cst_22 : f32 to vector<1x256xf32>
    %46 = vector.broadcast %cst_23 : f32 to vector<1x256xf32>
    %47 = arith.select %39, %45, %46 : vector<1x256xi1>, vector<1x256xf32>
    %cst_24 = arith.constant 1.600000e+00 : f32
    %48 = vector.broadcast %cst_24 : f32 to vector<1x256xf32>
    %49 = arith.select %37, %48, %47 : vector<1x256xi1>, vector<1x256xf32>
    %cst_25 = arith.constant 1.730000e+00 : f32
    %cst_26 = arith.constant 1.730000e+00 : f32
    %50 = vector.broadcast %cst_25 : f32 to vector<1x256xf32>
    %51 = vector.broadcast %cst_26 : f32 to vector<1x256xf32>
    %52 = arith.select %39, %50, %51 : vector<1x256xi1>, vector<1x256xf32>
    %cst_27 = arith.constant 1.560000e+00 : f32
    %53 = vector.broadcast %cst_27 : f32 to vector<1x256xf32>
    %54 = arith.select %37, %53, %52 : vector<1x256xi1>, vector<1x256xf32>
    %cst_28 = arith.constant 1.000000e+00 : f32
    %cst_29 = arith.constant 1.85946226 : f32
    %55 = vector.broadcast %cst_28 : f32 to vector<1x256xf32>
    %56 = vector.broadcast %cst_29 : f32 to vector<1x256xf32>
    %57 = arith.select %39, %55, %56 : vector<1x256xi1>, vector<1x256xf32>
    %cst_30 = arith.constant 4.2154479 : f32
    %58 = vector.broadcast %cst_30 : f32 to vector<1x256xf32>
    %59 = arith.select %37, %58, %57 : vector<1x256xi1>, vector<1x256xf32>
    %c0_31 = arith.constant 0 : index
    %c0_32 = arith.constant 0 : index
    %c0_33 = arith.constant 0 : index
    %60 = vector.load %arg3[%c0_31, %c0_32, %c0_33] : memref<1x256x3xf32, #tpu.memory_space<vmem>>, vector<1x256x3xf32>
    %61 = vector.shape_cast %60 : vector<1x256x3xf32> to vector<256x3xf32>
    %62 = tpu.transpose %61, [1, 0] : vector<256x3xf32> -> vector<3x256xf32>
    %c2_i32 = arith.constant 2 : i32
    %63 = vector.broadcast %c2_i32 : i32 to vector<3x256xi32>
    %64 = arith.cmpi eq, %27, %63 : vector<3x256xi32>
    %65 = vector.shape_cast %54 : vector<1x256xf32> to vector<1x256xf32>
    %66 = vector.broadcast %65 : vector<1x256xf32> to vector<3x256xf32>
    %67 = vector.shape_cast %59 : vector<1x256xf32> to vector<1x256xf32>
    %68 = vector.broadcast %67 : vector<1x256xf32> to vector<3x256xf32>
    %69 = arith.select %64, %66, %68 : vector<3x256xi1>, vector<3x256xf32>
    %c0_i32_34 = arith.constant 0 : i32
    %70 = vector.broadcast %c0_i32_34 : i32 to vector<3x256xi32>
    %71 = arith.cmpi eq, %27, %70 : vector<3x256xi32>
    %c1_i32_35 = arith.constant 1 : i32
    %72 = vector.broadcast %c1_i32_35 : i32 to vector<3x256xi32>
    %73 = arith.cmpi eq, %27, %72 : vector<3x256xi32>
    %74 = vector.shape_cast %49 : vector<1x256xf32> to vector<1x256xf32>
    %75 = vector.broadcast %74 : vector<1x256xf32> to vector<3x256xf32>
    %76 = vector.shape_cast %54 : vector<1x256xf32> to vector<1x256xf32>
    %77 = vector.broadcast %76 : vector<1x256xf32> to vector<3x256xf32>
    %78 = arith.select %73, %75, %77 : vector<3x256xi1>, vector<3x256xf32>
    %79 = vector.shape_cast %44 : vector<1x256xf32> to vector<1x256xf32>
    %80 = vector.broadcast %79 : vector<1x256xf32> to vector<3x256xf32>
    %81 = arith.select %71, %80, %78 : vector<3x256xi1>, vector<3x256xf32>
    %82 = vector.extract_strided_slice %14 {offsets = [0, 0], sizes = [3, 256], strides = [1, 1]} : vector<40x256xf32> to vector<3x256xf32>
    %83 = arith.mulf %82, %69 : vector<3x256xf32>
    %84 = arith.addf %83, %62 : vector<3x256xf32>
    %85 = vector.extract_strided_slice %14 {offsets = [3, 0], sizes = [3, 256], strides = [1, 1]} : vector<40x256xf32> to vector<3x256xf32>
    %86 = math.exp %85 : vector<3x256xf32>
    %87 = arith.mulf %86, %81 : vector<3x256xf32>
    %88 = vector.extract_strided_slice %14 {offsets = [6, 0], sizes = [12, 256], strides = [1, 1]} : vector<40x256xf32> to vector<12x256xf32>
    %89 = vector.extract_strided_slice %14 {offsets = [18, 0], sizes = [12, 256], strides = [1, 1]} : vector<40x256xf32> to vector<12x256xf32>
    %90 = tpu.iota {dimensions = array<i32: 0>} : vector<12x256xi32>
    %cst_36 = arith.constant dense<0xFF800000> : vector<256xf32>
    %91 = vector.multi_reduction <maximumf>, %88, %cst_36 [0] : vector<12x256xf32> to vector<256xf32>
    %92 = vector.shape_cast %91 : vector<256xf32> to vector<1x256xf32>
    %93 = vector.broadcast %92 : vector<1x256xf32> to vector<12x256xf32>
    %94 = arith.cmpf oge, %88, %93 : vector<12x256xf32>
    %c12_i32 = arith.constant 12 : i32
    %95 = vector.broadcast %c12_i32 : i32 to vector<12x256xi32>
    %96 = arith.select %94, %90, %95 : vector<12x256xi1>, vector<12x256xi32>
    %cst_37 = arith.constant dense<2147483647> : vector<256xi32>
    %97 = vector.multi_reduction <minsi>, %96, %cst_37 [0] : vector<12x256xi32> to vector<256xi32>
    %98 = vector.shape_cast %97 : vector<256xi32> to vector<1x256xi32>
    %99 = vector.broadcast %98 : vector<1x256xi32> to vector<12x256xi32>
    %100 = arith.cmpi eq, %90, %99 : vector<12x256xi32>
    %cst_38 = arith.constant 0.000000e+00 : f32
    %101 = vector.broadcast %cst_38 : f32 to vector<12x256xf32>
    %102 = arith.select %100, %89, %101 : vector<12x256xi1>, vector<12x256xf32>
    %cst_39 = arith.constant dense<0.000000e+00> : vector<256xf32>
    %103 = vector.multi_reduction <add>, %102, %cst_39 [0] : vector<12x256xf32> to vector<256xf32>
    %104 = vector.shape_cast %103 : vector<256xf32> to vector<1x256xf32>
    %105 = arith.sitofp %98 : vector<1x256xi32> to vector<1x256xf32>
    %cst_40 = arith.constant 0.52359879 : f32
    %106 = vector.broadcast %cst_40 : f32 to vector<1x256xf32>
    %107 = arith.mulf %105, %106 : vector<1x256xf32>
    %108 = arith.addf %107, %104 : vector<1x256xf32>
    %cst_41 = arith.constant 3.14159274 : f32
    %109 = vector.broadcast %cst_41 : f32 to vector<1x256xf32>
    %110 = arith.subf %108, %109 : vector<1x256xf32>
    %cst_42 = arith.constant 0.000000e+00 : f32
    %111 = vector.broadcast %cst_42 : f32 to vector<1x256xf32>
    %112 = tpu.concatenate %84, %87, %110, %111 in 0 : vector<3x256xf32>, vector<3x256xf32>, vector<1x256xf32>, vector<1x256xf32> -> vector<8x256xf32>
    %113 = tpu.transpose %112, [1, 0] : vector<8x256xf32> -> vector<256x8xf32>
    %114 = vector.extract_strided_slice %113 {offsets = [0, 0], sizes = [256, 7], strides = [1, 1]} : vector<256x8xf32> to vector<256x7xf32>
    %c0_43 = arith.constant 0 : index
    %c0_44 = arith.constant 0 : index
    %c0_45 = arith.constant 0 : index
    %115 = vector.load %arg9[%c0_43, %c0_44, %c0_45] : memref<1x256x7xf32, #tpu.memory_space<vmem>>, vector<1x256x7xf32>
    %116 = vector.shape_cast %115 : vector<1x256x7xf32> to vector<256x7xf32>
    %117 = vector.shape_cast %114 : vector<256x7xf32> to vector<1x256x7xf32>
    tpu.vector_store %arg9[%c0_43, %c0_44, %c0_45], %117 {strides = array<i32>} : memref<1x256x7xf32, #tpu.memory_space<vmem>>, vector<1x256x7xf32>,
    return
  }
  func.func @transform_0(%arg0: i32, %arg1: i32) -> (i32, i32, i32) {
    %c0_i32 = arith.constant 0 : i32
    %c0_i32_0 = arith.constant 0 : i32
    return %arg0, %c0_i32, %arg1 : i32, i32, i32
  }
  func.func @transform_1(%arg0: i32, %arg1: i32) -> (i32, i32, i32) {
    %c0_i32 = arith.constant 0 : i32
    %c0_i32_0 = arith.constant 0 : i32
    return %arg0, %arg1, %c0_i32 : i32, i32, i32
  }
  func.func @transform_2(%arg0: i32, %arg1: i32) -> (i32, i32) {
    %c0_i32 = arith.constant 0 : i32
    %c0_i32_0 = arith.constant 0 : i32
    %c0_i32_1 = arith.constant 0 : i32
    return %c0_i32, %c0_i32_0 : i32, i32
  }
  func.func @transform_3(%arg0: i32, %arg1: i32) -> (i32, i32) {
    %c0_i32 = arith.constant 0 : i32
    %c0_i32_0 = arith.constant 0 : i32
    %c0_i32_1 = arith.constant 0 : i32
    return %c0_i32, %c0_i32_0 : i32, i32
  }
  func.func @transform_4(%arg0: i32, %arg1: i32) -> (i32, i32) {
    %c0_i32 = arith.constant 0 : i32
    %c0_i32_0 = arith.constant 0 : i32
    %c0_i32_1 = arith.constant 0 : i32
    return %c0_i32, %c0_i32_0 : i32, i32
  }
  func.func @transform_5(%arg0: i32, %arg1: i32) -> (i32, i32, i32) {
    %c0_i32 = arith.constant 0 : i32
    %c0_i32_0 = arith.constant 0 : i32
    return %arg0, %arg1, %c0_i32 : i32, i32, i32
  }
  func.func @transform_6(%arg0: i32, %arg1: i32) -> (i32, i32, i32) {
    %c0_i32 = arith.constant 0 : i32
    %c0_i32_0 = arith.constant 0 : i32
    return %arg0, %arg1, %c0_i32 : i32, i32, i32
  }
  func.func @transform_7(%arg0: i32, %arg1: i32) -> (i32, i32, i32) {
    %c0_i32 = arith.constant 0 : i32
    %c0_i32_0 = arith.constant 0 : i32
    return %arg0, %arg1, %c0_i32 : i32, i32, i32
  }
}

</mosaic_0001>

<llo_original>
// kernel: iassd_head_forward.1
$region0: #{iassd_head_forward.1}
  #allocation0 [shape = 'u32[]', space=smem, size = 0x4, offset = 0x4, fixed_abs, tag = 'smem constant byte address 0x4 - core index']
  #allocation1 [shape = 'u32[72,128]{1,0:T(1,128)}', space=vmem, size = 0x9000, scoped, tag = 'internal scratch']
  %s0 = inlined_call_operand.vmem [shape: f32[2,32,256], index: 0, kind: input, shape index: {}]
  %s1 = inlined_call_operand.vmem [shape: f32[2,256,3], index: 1, kind: input, shape index: {}]
  %s2 = inlined_call_operand.vmem [shape: bf16[128,40], index: 2, kind: input, shape index: {}]
  %s3 = inlined_call_operand.vmem [shape: bf16[40,128], index: 3, kind: input, shape index: {}]
  %s4 = inlined_call_operand.vmem [shape: f32[40,1], index: 4, kind: input, shape index: {}]
  %s5 = inlined_call_operand.vmem [shape: bf16[2,256,30], index: 5, kind: output, shape index: {0}]
  %s6 = inlined_call_operand.vmem [shape: bf16[2,256,3], index: 6, kind: output, shape index: {1}]
  %s7 = inlined_call_operand.vmem [shape: f32[2,256,7], index: 7, kind: output, shape index: {2}]
  %8 = xla_tuple %s5, %s6, %s7
  %s9 = sld [smem:[#allocation0]]
  $region69: #{iassd_head_forward.1} parent=0
    _
  %s11 = ssub.s32 1, %s9
  %s12 = scalar_select 0, %s11, %s9
  loop: start=0, step=1, limit=4
  $region2: #{iassd_head_forward.1} parent=0 // loop_pre_header
    _
  $region3: #{iassd_head_forward.1} parent=0 // loop_header
    %s14 = sphi 0, %s18
    %p15 = scmp.ge.s32.totalorder %s14, 4
    %s21 = sphi 0, %s33
    %s22 = sphi 0, %s29
    %s23 = sphi 0, %s21
    %s24 = sphi 0, %s22
    %s25 = sphi 0, %s23
    %s26 = sphi 0, %s24
    %s38 = sphi 0, %s40
    %s41 = sphi 0, %s38
    %s42 = sphi 0, %s41
    %s58 = sphi 0, %s42
    %s66 = sphi 0, %s68
    %s69 = sphi 0, %s66
    %s70 = sphi 0, %s69
    %s86 = sphi 0, %s70
    %s90 = sphi 0, %s90
    %s92 = sphi 0, %s90
    %s93 = sphi 0, %s92
    %s107 = sphi 0, %s93
    %s111 = sphi 0, %s111
    %s113 = sphi 0, %s111
    %s114 = sphi 0, %s113
    %s128 = sphi 0, %s114
    %s132 = sphi 0, %s132
    %s134 = sphi 0, %s132
    %s135 = sphi 0, %s134
    %s149 = sphi 0, %s135
    %s157 = sphi 0, %s159
    %s160 = sphi 0, %s157
    %s161 = sphi 0, %s160
    %s177 = sphi 0, %s161
    %s185 = sphi 0, %s187
    %s188 = sphi 0, %s185
    %s189 = sphi 0, %s188
    %s205 = sphi 0, %s189
    %s213 = sphi 0, %s215
    %s216 = sphi 0, %s213
    %s217 = sphi 0, %s216
    %s233 = sphi 0, %s217
  $region4: #{iassd_head_forward.1} parent=0 // loop_header_branch
    %17 = sbr.rel (%p15) target = $region8
  $region5: #{iassd_head_forward.1} parent=0 // loop_body
    %s19 = ssub.s32 %s14, 1
    %s20 = ssub.s32 %s14, 2
    %s27 = sadd.s32 1, %s22
    %p28 = scmp.ge.s32.totalorder %s27, 1
    %s29 = scalar_select %p28, 0, %s27
    %s30 = sadd.s32 1, %s21
    %s31 = scalar_select %p28, %s30, %s21
    %p32 = scmp.ge.s32.totalorder %s31, 2
    %s33 = scalar_select %p32, 0, %s31
    %s34 = ssub.s32 %s21, %s33
    %s35 = ssub.s32 %s22, %s29
    %s36 = sor.u32 %s34, %s35
    %p37 = scmp.eq.s32.totalorder %s36, 0
    %s39 = sadd.s32 %s38, 1
    %s40 = scalar_select %p37, %s38, %s39
    %p43 = pneg %p37
    %p44 = scmp.eq.s32.totalorder %s14, 1
    %p45 = por %p43, %p44
    %p46 = scmp.ne.s32.totalorder %s38, %s41
    %p47 = scmp.eq.s32.totalorder %s14, 0
    %p48 = por %p46, %p47
    %p49 = scmp.ne.s32.totalorder %s38, %s41
    %p50 = scmp.eq.s32.totalorder %s19, 1
    %p51 = por %p49, %p50
    %p52 = scmp.ne.s32.totalorder %s41, %s42
    %p53 = scmp.eq.s32.totalorder %s19, 0
    %p54 = por %p52, %p53
    %p55 = scmp.ne.s32.totalorder %s41, %s42
    %p56 = scmp.eq.s32.totalorder %s20, 1
    %p57 = por %p55, %p56
    %p59 = scmp.ne.s32.totalorder %s42, %s58
    %p60 = scmp.eq.s32.totalorder %s20, 0
    %p61 = por %p59, %p60
    %s62 = ssub.s32 %s21, %s33
    %s63 = ssub.s32 %s22, %s29
    %s64 = sor.u32 %s62, %s63
    %p65 = scmp.eq.s32.totalorder %s64, 0
    %s67 = sadd.s32 %s66, 1
    %s68 = scalar_select %p65, %s66, %s67
    %p71 = pneg %p65
    %p72 = scmp.eq.s32.totalorder %s14, 1
    %p73 = por %p71, %p72
    %p74 = scmp.ne.s32.totalorder %s66, %s69
    %p75 = scmp.eq.s32.totalorder %s14, 0
    %p76 = por %p74, %p75
    %p77 = scmp.ne.s32.totalorder %s66, %s69
    %p78 = scmp.eq.s32.totalorder %s19, 1
    %p79 = por %p77, %p78
    %p80 = scmp.ne.s32.totalorder %s69, %s70
    %p81 = scmp.eq.s32.totalorder %s19, 0
    %p82 = por %p80, %p81
    %p83 = scmp.ne.s32.totalorder %s69, %s70
    %p84 = scmp.eq.s32.totalorder %s20, 1
    %p85 = por %p83, %p84
    %p87 = scmp.ne.s32.totalorder %s70, %s86
    %p88 = scmp.eq.s32.totalorder %s20, 0
    %p89 = por %p87, %p88
    %s91 = sadd.s32 %s90, 1
    %p94 = scmp.eq.s32.totalorder %s14, 1
    %p95 = scmp.ne.s32.totalorder %s90, %s92
    %p96 = scmp.eq.s32.totalorder %s14, 0
    %p97 = por %p95, %p96
    %p98 = scmp.ne.s32.totalorder %s90, %s92
    %p99 = scmp.eq.s32.totalorder %s19, 1
    %p100 = por %p98, %p99
    %p101 = scmp.ne.s32.totalorder %s92, %s93
    %p102 = scmp.eq.s32.totalorder %s19, 0
    %p103 = por %p101, %p102
    %p104 = scmp.ne.s32.totalorder %s92, %s93
    %p105 = scmp.eq.s32.totalorder %s20, 1
    %p106 = por %p104, %p105
    %p108 = scmp.ne.s32.totalorder %s93, %s107
    %p109 = scmp.eq.s32.totalorder %s20, 0
    %p110 = por %p108, %p109
    %s112 = sadd.s32 %s111, 1
    %p115 = scmp.eq.s32.totalorder %s14, 1
    %p116 = scmp.ne.s32.totalorder %s111, %s113
    %p117 = scmp.eq.s32.totalorder %s14, 0
    %p118 = por %p116, %p117
    %p119 = scmp.ne.s32.totalorder %s111, %s113
    %p120 = scmp.eq.s32.totalorder %s19, 1
    %p121 = por %p119, %p120
    %p122 = scmp.ne.s32.totalorder %s113, %s114
    %p123 = scmp.eq.s32.totalorder %s19, 0
    %p124 = por %p122, %p123
    %p125 = scmp.ne.s32.totalorder %s113, %s114
    %p126 = scmp.eq.s32.totalorder %s20, 1
    %p127 = por %p125, %p126
    %p129 = scmp.ne.s32.totalorder %s114, %s128
    %p130 = scmp.eq.s32.totalorder %s20, 0
    %p131 = por %p129, %p130
    %s133 = sadd.s32 %s132, 1
    %p136 = scmp.eq.s32.totalorder %s14, 1
    %p137 = scmp.ne.s32.totalorder %s132, %s134
    %p138 = scmp.eq.s32.totalorder %s14, 0
    %p139 = por %p137, %p138
    %p140 = scmp.ne.s32.totalorder %s132, %s134
    %p141 = scmp.eq.s32.totalorder %s19, 1
    %p142 = por %p140, %p141
    %p143 = scmp.ne.s32.totalorder %s134, %s135
    %p144 = scmp.eq.s32.totalorder %s19, 0
    %p145 = por %p143, %p144
    %p146 = scmp.ne.s32.totalorder %s134, %s135
    %p147 = scmp.eq.s32.totalorder %s20, 1
    %p148 = por %p146, %p147
    %p150 = scmp.ne.s32.totalorder %s135, %s149
    %p151 = scmp.eq.s32.totalorder %s20, 0
    %p152 = por %p150, %p151
    %s153 = ssub.s32 %s21, %s33
    %s154 = ssub.s32 %s22, %s29
    %s155 = sor.u32 %s153, %s154
    %p156 = scmp.eq.s32.totalorder %s155, 0
    %s158 = sadd.s32 %s157, 1
    %s159 = scalar_select %p156, %s157, %s158
    %p162 = pneg %p156
    %p163 = scmp.eq.s32.totalorder %s14, 1
    %p164 = por %p162, %p163
    %p165 = scmp.ne.s32.totalorder %s157, %s160
    %p166 = scmp.eq.s32.totalorder %s14, 0
    %p167 = por %p165, %p166
    %p168 = scmp.ne.s32.totalorder %s157, %s160
    %p169 = scmp.eq.s32.totalorder %s19, 1
    %p170 = por %p168, %p169
    %p171 = scmp.ne.s32.totalorder %s160, %s161
    %p172 = scmp.eq.s32.totalorder %s19, 0
    %p173 = por %p171, %p172
    %p174 = scmp.ne.s32.totalorder %s160, %s161
    %p175 = scmp.eq.s32.totalorder %s20, 1
    %p176 = por %p174, %p175
    %p178 = scmp.ne.s32.totalorder %s161, %s177
    %p179 = scmp.eq.s32.totalorder %s20, 0
    %p180 = por %p178, %p179
    %s181 = ssub.s32 %s21, %s33
    %s182 = ssub.s32 %s22, %s29
    %s183 = sor.u32 %s181, %s182
    %p184 = scmp.eq.s32.totalorder %s183, 0
    %s186 = sadd.s32 %s185, 1
    %s187 = scalar_select %p184, %s185, %s186
    %p190 = pneg %p184
    %p191 = scmp.eq.s32.totalorder %s14, 1
    %p192 = por %p190, %p191
    %p193 = scmp.ne.s32.totalorder %s185, %s188
    %p194 = scmp.eq.s32.totalorder %s14, 0
    %p195 = por %p193, %p194
    %p196 = scmp.ne.s32.totalorder %s185, %s188
    %p197 = scmp.eq.s32.totalorder %s19, 1
    %p198 = por %p196, %p197
    %p199 = scmp.ne.s32.totalorder %s188, %s189
    %p200 = scmp.eq.s32.totalorder %s19, 0
    %p201 = por %p199, %p200
    %p202 = scmp.ne.s32.totalorder %s188, %s189
    %p203 = scmp.eq.s32.totalorder %s20, 1
    %p204 = por %p202, %p203
    %p206 = scmp.ne.s32.totalorder %s189, %s205
    %p207 = scmp.eq.s32.totalorder %s20, 0
    %p208 = por %p206, %p207
    %s209 = ssub.s32 %s21, %s33
    %s210 = ssub.s32 %s22, %s29
    %s211 = sor.u32 %s209, %s210
    %p212 = scmp.eq.s32.totalorder %s211, 0
    %s214 = sadd.s32 %s213, 1
    %s215 = scalar_select %p212, %s213, %s214
    %p218 = pneg %p212
    %p219 = scmp.eq.s32.totalorder %s14, 1
    %p220 = por %p218, %p219
    %p221 = scmp.ne.s32.totalorder %s213, %s216
    %p222 = scmp.eq.s32.totalorder %s14, 0
    %p223 = por %p221, %p222
    %p224 = scmp.ne.s32.totalorder %s213, %s216
    %p225 = scmp.eq.s32.totalorder %s19, 1
    %p226 = por %p224, %p225
    %p227 = scmp.ne.s32.totalorder %s216, %s217
    %p228 = scmp.eq.s32.totalorder %s19, 0
    %p229 = por %p227, %p228
    %p230 = scmp.ne.s32.totalorder %s216, %s217
    %p231 = scmp.eq.s32.totalorder %s20, 1
    %p232 = por %p230, %p231
    %p234 = scmp.ne.s32.totalorder %s217, %s233
    %p235 = scmp.eq.s32.totalorder %s20, 0
    %p236 = por %p234, %p235
    %p237 = scmp.le.s32.totalorder 1, %s14
    %p238 = scmp.lt.s32.totalorder %s14, 3
    %p239 = pnand %p237, %p238
    %p240 = pneg %p239
    // Predicated region
    $region9: #{iassd_head_forward.1} parent=5 // pred_check
      _
    $region10: #{iassd_head_forward.1} parent=5 // pred_check_branch
      %242 = sbr.rel (%p239) target = $region12
    $region11: #{iassd_head_forward.1} parent=5 // pred_region
      %s243 = ssub.s32 %s14, 1
      // Predicated region
      $region13: #{iassd_head_forward.1} parent=11 // pred_check
        %p244 = pneg %p103
      $region14: #{iassd_head_forward.1} parent=11 // pred_check_branch
        %246 = sbr.rel (%p244) target = $region16
      $region15: #{iassd_head_forward.1} parent=11 // pred_region
        _
      $region16: #{iassd_head_forward.1} parent=11 // pred_fallthru
        _
      // Predicated region
      $region17: #{iassd_head_forward.1} parent=11 // pred_check
        %p247 = pneg %p124
      $region18: #{iassd_head_forward.1} parent=11 // pred_check_branch
        %249 = sbr.rel (%p247) target = $region20
      $region19: #{iassd_head_forward.1} parent=11 // pred_region
        _
      $region20: #{iassd_head_forward.1} parent=11 // pred_fallthru
        _
      // Predicated region
      $region21: #{iassd_head_forward.1} parent=11 // pred_check
        %p250 = pneg %p145
      $region22: #{iassd_head_forward.1} parent=11 // pred_check_branch
        %252 = sbr.rel (%p250) target = $region24
      $region23: #{iassd_head_forward.1} parent=11 // pred_region
        _
      $region24: #{iassd_head_forward.1} parent=11 // pred_fallthru
        _
    $region12: #{iassd_head_forward.1} parent=5 // pred_fallthru
      _
    %p253 = scmp.lt.s32.totalorder %s14, 2
    // Predicated region
    $region25: #{iassd_head_forward.1} parent=5 // pred_check
      %p254 = pneg %p253
    $region26: #{iassd_head_forward.1} parent=5 // pred_check_branch
      %256 = sbr.rel (%p254) target = $region28
    $region27: #{iassd_head_forward.1} parent=5 // pred_region
      // Predicated region
      $region29: #{iassd_head_forward.1} parent=27 // pred_check
        %p257 = pneg %p48
      $region30: #{iassd_head_forward.1} parent=27 // pred_check_branch
        %259 = sbr.rel (%p257) target = $region32
      $region31: #{iassd_head_forward.1} parent=27 // pred_region
        %s260 = smul.u32 2, %s22
        %p261 = scmp.lt.s32.totalorder %s21, 1
        %s262 = scalar_select %p261, %s21, 1
        %p263 = scmp.lt.s32.totalorder %s260, 1
        %s264 = scalar_select %p263, %s260, 1
        %s265 = smul.addr %s262, 8
        %s266 = sadd.s32 %s264, %s265
        %s267 = smul.addr %s266, 8
        %s268 = scalar_lea.vmem %s0, %s267
        %s269 = smul.u32 2, %s22
      $region32: #{iassd_head_forward.1} parent=27 // pred_fallthru
        _
      // Predicated region
      $region33: #{iassd_head_forward.1} parent=27 // pred_check
        %p270 = pneg %p76
      $region34: #{iassd_head_forward.1} parent=27 // pred_check_branch
        %272 = sbr.rel (%p270) target = $region36
      $region35: #{iassd_head_forward.1} parent=27 // pred_region
        %s273 = smul.u32 32, %s22
        %p274 = scmp.lt.s32.totalorder %s21, 1
        %s275 = scalar_select %p274, %s21, 1
        %p276 = scmp.lt.s32.totalorder %s273, 31
        %s277 = scalar_select %p276, %s273, 31
        %s278 = smul.addr %s275, 32
        %s279 = sadd.s32 %s277, %s278
        %s280 = smul.addr %s279, 8
        %s281 = scalar_lea.vmem %s1, %s280
        %s282 = smul.u32 32, %s22
      $region36: #{iassd_head_forward.1} parent=27 // pred_fallthru
        _
    $region28: #{iassd_head_forward.1} parent=5 // pred_fallthru
      _
    %p283 = scmp.le.s32.totalorder 1, %s14
    %p284 = scmp.lt.s32.totalorder %s14, 3
    %p285 = pnand %p283, %p284
    %p286 = pneg %p285
    // Predicated region
    $region37: #{iassd_head_forward.1} parent=5 // pred_check
      _
    $region38: #{iassd_head_forward.1} parent=5 // pred_check_branch
      %288 = sbr.rel (%p285) target = $region40
    $region39: #{iassd_head_forward.1} parent=5 // pred_region
      %s289 = ssub.s32 %s14, 1
      %s290 = smul.u32 2, %s24
      %p291 = scmp.lt.s32.totalorder %s23, 1
      %s292 = scalar_select %p291, %s23, 1
      %p293 = scmp.lt.s32.totalorder %s290, 1
      %s294 = scalar_select %p293, %s290, 1
      %s295 = smul.addr %s292, 8
      %s296 = sadd.s32 %s294, %s295
      %s297 = smul.addr %s296, 8
      %s298 = scalar_lea.vmem %s0, %s297
      %p299 = pneg %p54
      %p300 = pneg %p51
      %s301 = smul.u32 32, %s24
      %p302 = scmp.lt.s32.totalorder %s23, 1
      %s303 = scalar_select %p302, %s23, 1
      %p304 = scmp.lt.s32.totalorder %s301, 31
      %s305 = scalar_select %p304, %s301, 31
      %s306 = smul.addr %s303, 32
      %s307 = sadd.s32 %s305, %s306
      %s308 = smul.addr %s307, 8
      %s309 = scalar_lea.vmem %s1, %s308
      %p310 = pneg %p82
      %p311 = pneg %p79
      %p312 = pneg %p103
      %p313 = pneg %p100
      %p314 = pneg %p124
      %p315 = pneg %p121
      %p316 = pneg %p145
      %p317 = pneg %p142
      %p318 = pneg %p173
      %p319 = pneg %p170
      %s320 = smul.u32 32, %s24
      %p321 = scmp.lt.s32.totalorder %s23, 1
      %s322 = scalar_select %p321, %s23, 1
      %p323 = scmp.lt.s32.totalorder %s320, 31
      %s324 = scalar_select %p323, %s320, 31
      %s325 = smul.addr %s322, 32
      %s326 = sadd.s32 %s324, %s325
      %s327 = smul.addr %s326, 4
      %s328 = scalar_lea.vmem %s5, %s327
      %p329 = pneg %p201
      %p330 = pneg %p198
      %s331 = smul.u32 32, %s24
      %p332 = scmp.lt.s32.totalorder %s23, 1
      %s333 = scalar_select %p332, %s23, 1
      %p334 = scmp.lt.s32.totalorder %s331, 31
      %s335 = scalar_select %p334, %s331, 31
      %s336 = smul.addr %s333, 32
      %s337 = sadd.s32 %s335, %s336
      %s338 = smul.addr %s337, 4
      %s339 = scalar_lea.vmem %s6, %s338
      %p340 = pneg %p229
      %p341 = pneg %p226
      %s342 = smul.u32 32, %s24
      %p343 = scmp.lt.s32.totalorder %s23, 1
      %s344 = scalar_select %p343, %s23, 1
      %p345 = scmp.lt.s32.totalorder %s342, 31
      %s346 = scalar_select %p345, %s342, 31
      %s347 = smul.addr %s344, 32
      %s348 = sadd.s32 %s346, %s347
      %s349 = smul.addr %s348, 8
      %s350 = scalar_lea.vmem %s7, %s349
      %s351 = smul.u32 2, %s24
      %p352 = scmp.lt.s32.totalorder %s23, 1
      %s353 = scalar_select %p352, %s23, 1
      %p354 = scmp.lt.s32.totalorder %s351, 1
      %s355 = scalar_select %p354, %s351, 1
      %s356 = smul.addr %s353, 8
      %s357 = sadd.s32 %s355, %s356
      %s358 = smul.addr %s357, 8
      %s359 = scalar_lea.vmem %s0, %s358
      %s360 = smul.u32 2, %s24
      %s361 = smul.u32 32, %s24
      %p362 = scmp.lt.s32.totalorder %s23, 1
      %s363 = scalar_select %p362, %s23, 1
      %p364 = scmp.lt.s32.totalorder %s361, 31
      %s365 = scalar_select %p364, %s361, 31
      %s366 = smul.addr %s363, 32
      %s367 = sadd.s32 %s365, %s366
      %s368 = smul.addr %s367, 8
      %s369 = scalar_lea.vmem %s1, %s368
      %s370 = smul.u32 32, %s24
      %s371 = smul.u32 32, %s24
      %p372 = scmp.lt.s32.totalorder %s23, 1
      %s373 = scalar_select %p372, %s23, 1
      %p374 = scmp.lt.s32.totalorder %s371, 31
      %s375 = scalar_select %p374, %s371, 31
      %s376 = smul.addr %s373, 32
      %s377 = sadd.s32 %s375, %s376
      %s378 = smul.addr %s377, 4
      %s379 = scalar_lea.vmem %s5, %s378
      %s380 = smul.u32 32, %s24
      %s381 = smul.u32 32, %s24
      %p382 = scmp.lt.s32.totalorder %s23, 1
      %s383 = scalar_select %p382, %s23, 1
      %p384 = scmp.lt.s32.totalorder %s381, 31
      %s385 = scalar_select %p384, %s381, 31
      %s386 = smul.addr %s383, 32
      %s387 = sadd.s32 %s385, %s386
      %s388 = smul.addr %s387, 4
      %s389 = scalar_lea.vmem %s6, %s388
      %s390 = smul.u32 32, %s24
      %s391 = smul.u32 32, %s24
      %p392 = scmp.lt.s32.totalorder %s23, 1
      %s393 = scalar_select %p392, %s23, 1
      %p394 = scmp.lt.s32.totalorder %s391, 31
      %s395 = scalar_select %p394, %s391, 31
      %s396 = smul.addr %s393, 32
      %s397 = sadd.s32 %s395, %s396
      %s398 = smul.addr %s397, 8
      %s399 = scalar_lea.vmem %s7, %s398
      %s400 = smul.u32 32, %s24
      %v403 = vld [vmem:[%s359] sm:$0xff]
      %v404 = vld [vmem:[%s359 + $0x8] sm:$0xff]
      %v405 = vld [vmem:[%s359 + $0x10] sm:$0xff]
      %v406 = vld [vmem:[%s359 + $0x18] sm:$0xff]
      %v407 = vld [vmem:[%s359 + $0x20] sm:$0xff]
      %v408 = vld [vmem:[%s359 + $0x28] sm:$0xff]
      %v409 = vld [vmem:[%s359 + $0x30] sm:$0xff]
      %v410 = vld [vmem:[%s359 + $0x38] sm:$0xff]
      %v411 = vpack.c.bf16 %v404, %v403
      %v412 = vpack.c.bf16 %v406, %v405
      %v413 = vpack.c.bf16 %v408, %v407
      %v414 = vpack.c.bf16 %v410, %v409
      %v419 = vunpack.c.l.b16 %v411
      %v420 = vunpack.c.h.b16 %v411
      %v421 = vunpack.c.l.b16 %v412
      %v422 = vunpack.c.h.b16 %v412
      %v423 = vunpack.c.l.b16 %v413
      %v424 = vunpack.c.h.b16 %v413
      %v425 = vunpack.c.l.b16 %v414
      %v426 = vunpack.c.h.b16 %v414
      %v427 = vpack.c.b16 %v421, %v419
      %v428 = vpack.c.b16 %v422, %v420
      %v429 = vpack.c.b16 %v425, %v423
      %v430 = vpack.c.b16 %v426, %v424
      %v435 = vld [vmem:[%s2] sm:$0xf]
      %v436 = vld [vmem:[%s2 + $0x4] sm:$0xf]
      %v437 = vld [vmem:[%s2 + $0x8] sm:$0xf]
      %v438 = vld [vmem:[%s2 + $0xc] sm:$0xf]
      %v439 = vld [vmem:[%s2 + $0x10] sm:$0xf]
      %v440 = vld [vmem:[%s2 + $0x14] sm:$0xf]
      %v441 = vld [vmem:[%s2 + $0x18] sm:$0xf]
      %v442 = vld [vmem:[%s2 + $0x1c] sm:$0xf]
      %v443 = vld [vmem:[%s2 + $0x20] sm:$0xf]
      %v444 = vld [vmem:[%s2 + $0x24] sm:$0xf]
      %v445 = vld [vmem:[%s2 + $0x28] sm:$0xf]
      %v446 = vld [vmem:[%s2 + $0x2c] sm:$0xf]
      %v447 = vld [vmem:[%s2 + $0x30] sm:$0xf]
      %v448 = vld [vmem:[%s2 + $0x34] sm:$0xf]
      %v449 = vld [vmem:[%s2 + $0x38] sm:$0xf]
      %v450 = vld [vmem:[%s2 + $0x3c] sm:$0xf]
      %v467 = vunpack.c.l.b16 %v435
      %v468 = vunpack.c.l.b16 %v436
      %v469 = vunpack.c.l.b16 %v437
      %v470 = vunpack.c.l.b16 %v438
      %v471 = vunpack.c.l.b16 %v439
      %v472 = vunpack.c.l.b16 %v440
      %v473 = vunpack.c.l.b16 %v441
      %v474 = vunpack.c.l.b16 %v442
      %v475 = vunpack.c.l.b16 %v443
      %v476 = vunpack.c.l.b16 %v444
      %v477 = vunpack.c.l.b16 %v445
      %v478 = vunpack.c.l.b16 %v446
      %v479 = vunpack.c.l.b16 %v447
      %v480 = vunpack.c.l.b16 %v448
      %v481 = vunpack.c.l.b16 %v449
      %v482 = vunpack.c.l.b16 %v450
      %v483 = vpack.c.b16 %v468, %v467
      %v484 = vpack.c.b16 %v470, %v469
      %v485 = vpack.c.b16 %v472, %v471
      %v486 = vpack.c.b16 %v474, %v473
      %v487 = vpack.c.b16 %v476, %v475
      %v488 = vpack.c.b16 %v478, %v477
      %v489 = vpack.c.b16 %v480, %v479
      %v490 = vpack.c.b16 %v482, %v481
      %vm491 = vcmask 326656
      %v493 = vsel %vm491, %v483, 0
      %v496 = vsel %vm491, %v484, 0
      %v499 = vsel %vm491, %v485, 0
      %v502 = vsel %vm491, %v486, 0
      %v505 = vsel %vm491, %v487, 0
      %v508 = vsel %vm491, %v488, 0
      %v511 = vsel %vm491, %v489, 0
      %v514 = vsel %vm491, %v490, 0
      %vm516 = vcmask 1043456
      %v518 = vsel %vm516, 1065369472, 0
      %520 = vmatpush.bf16.msra.mxu0 0
      %521 = vmatpush.bf16.msra.mxu0 0
      %522 = vmatpush.bf16.msra.mxu0 0
      %523 = vmatpush.bf16.msra.mxu0 0
      %524 = vmatpush.bf16.msra.mxu0 0
      %525 = vmatpush.bf16.msra.mxu0 %v518
      %526 = vmatpush.bf16.msra.mxu0 %v429
      %527 = vmatpush.bf16.msra.mxu0 %v427
      %528 = vmatmul.bf16.gmra.mxu0 %v493
      %v529 = vpop.f32.mrf.mxu0
      %v530 = vadd.f32 0.0, %v529
      %v531 = vpop.f32.mrf.mxu0
      %v532 = vadd.f32 0.0, %v531
      %533 = vmatmul.bf16.gmra.mxu0 %v496
      %v534 = vpop.f32.mrf.mxu0
      %v535 = vadd.f32 0.0, %v534
      %v536 = vpop.f32.mrf.mxu0
      %v537 = vadd.f32 0.0, %v536
      %538 = vmatmul.bf16.gmra.mxu0 %v499
      %v539 = vpop.f32.mrf.mxu0
      %v540 = vadd.f32 0.0, %v539
      %v541 = vpop.f32.mrf.mxu0
      %v542 = vadd.f32 0.0, %v541
      %543 = vmatmul.bf16.gmra.mxu0 %v502
      %v544 = vpop.f32.mrf.mxu0
      %v545 = vadd.f32 0.0, %v544
      %v546 = vpop.f32.mrf.mxu0
      %v547 = vadd.f32 0.0, %v546
      %548 = vmatmul.bf16.gmra.mxu0 %v505
      %v549 = vpop.f32.mrf.mxu0
      %v550 = vadd.f32 0.0, %v549
      %v551 = vpop.f32.mrf.mxu0
      %v552 = vadd.f32 0.0, %v551
      %553 = vmatmul.bf16.gmra.mxu0 %v508
      %v554 = vpop.f32.mrf.mxu0
      %v555 = vadd.f32 0.0, %v554
      %v556 = vpop.f32.mrf.mxu0
      %v557 = vadd.f32 0.0, %v556
      %558 = vmatmul.bf16.gmra.mxu0 %v511
      %v559 = vpop.f32.mrf.mxu0
      %v560 = vadd.f32 0.0, %v559
      %v561 = vpop.f32.mrf.mxu0
      %v562 = vadd.f32 0.0, %v561
      %563 = vmatmul.bf16.gmra.mxu0 %v514
      %v564 = vpop.f32.mrf.mxu0
      %v565 = vadd.f32 0.0, %v564
      %v566 = vpop.f32.mrf.mxu0
      %v567 = vadd.f32 0.0, %v566
      %568 = vdwg.mxu0
      %569 = vmatpush.bf16.msra.mxu0 0
      %570 = vmatpush.bf16.msra.mxu0 0
      %571 = vmatpush.bf16.msra.mxu0 0
      %572 = vmatpush.bf16.msra.mxu0 0
      %573 = vmatpush.bf16.msra.mxu0 0
      %574 = vmatpush.bf16.msra.mxu0 %v518
      %575 = vmatpush.bf16.msra.mxu0 %v430
      %576 = vmatpush.bf16.msra.mxu0 %v428
      %577 = vmatmul.bf16.gmra.mxu0 %v493
      %v578 = vpop.f32.mrf.mxu0
      %v579 = vadd.f32 0.0, %v578
      %v580 = vpop.f32.mrf.mxu0
      %v581 = vadd.f32 0.0, %v580
      %582 = vmatmul.bf16.gmra.mxu0 %v496
      %v583 = vpop.f32.mrf.mxu0
      %v584 = vadd.f32 0.0, %v583
      %v585 = vpop.f32.mrf.mxu0
      %v586 = vadd.f32 0.0, %v585
      %587 = vmatmul.bf16.gmra.mxu0 %v499
      %v588 = vpop.f32.mrf.mxu0
      %v589 = vadd.f32 0.0, %v588
      %v590 = vpop.f32.mrf.mxu0
      %v591 = vadd.f32 0.0, %v590
      %592 = vmatmul.bf16.gmra.mxu0 %v502
      %v593 = vpop.f32.mrf.mxu0
      %v594 = vadd.f32 0.0, %v593
      %v595 = vpop.f32.mrf.mxu0
      %v596 = vadd.f32 0.0, %v595
      %597 = vmatmul.bf16.gmra.mxu0 %v505
      %v598 = vpop.f32.mrf.mxu0
      %v599 = vadd.f32 0.0, %v598
      %v600 = vpop.f32.mrf.mxu0
      %v601 = vadd.f32 0.0, %v600
      %602 = vmatmul.bf16.gmra.mxu0 %v508
      %v603 = vpop.f32.mrf.mxu0
      %v604 = vadd.f32 0.0, %v603
      %v605 = vpop.f32.mrf.mxu0
      %v606 = vadd.f32 0.0, %v605
      %607 = vmatmul.bf16.gmra.mxu0 %v511
      %v608 = vpop.f32.mrf.mxu0
      %v609 = vadd.f32 0.0, %v608
      %v610 = vpop.f32.mrf.mxu0
      %v611 = vadd.f32 0.0, %v610
      %612 = vmatmul.bf16.gmra.mxu0 %v514
      %v613 = vpop.f32.mrf.mxu0
      %v614 = vadd.f32 0.0, %v613
      %v615 = vpop.f32.mrf.mxu0
      %v616 = vadd.f32 0.0, %v615
      %617 = vdwg.mxu0
      %v618 = vmax.f32 %v530, 0.0
      %v619 = vmax.f32 %v579, 0.0
      %v620 = vmax.f32 %v532, 0.0
      %v621 = vmax.f32 %v581, 0.0
      %v622 = vmax.f32 %v535, 0.0
      %v623 = vmax.f32 %v584, 0.0
      %v624 = vmax.f32 %v537, 0.0
      %v625 = vmax.f32 %v586, 0.0
      %v626 = vmax.f32 %v540, 0.0
      %v627 = vmax.f32 %v589, 0.0
      %v628 = vmax.f32 %v542, 0.0
      %v629 = vmax.f32 %v591, 0.0
      %v630 = vmax.f32 %v545, 0.0
      %v631 = vmax.f32 %v594, 0.0
      %v632 = vmax.f32 %v547, 0.0
      %v633 = vmax.f32 %v596, 0.0
      %v634 = vmax.f32 %v550, 0.0
      %v635 = vmax.f32 %v599, 0.0
      %v636 = vmax.f32 %v552, 0.0
      %v637 = vmax.f32 %v601, 0.0
      %v638 = vmax.f32 %v555, 0.0
      %v639 = vmax.f32 %v604, 0.0
      %v640 = vmax.f32 %v557, 0.0
      %v641 = vmax.f32 %v606, 0.0
      %v642 = vmax.f32 %v560, 0.0
      %v643 = vmax.f32 %v609, 0.0
      %v644 = vmax.f32 %v562, 0.0
      %v645 = vmax.f32 %v611, 0.0
      %v646 = vmax.f32 %v565, 0.0
      %v647 = vmax.f32 %v614, 0.0
      %v648 = vmax.f32 %v567, 0.0
      %v649 = vmax.f32 %v616, 0.0
      %v650 = vld [vmem:[%s3] sm:$0xf]
      %v651 = vld [vmem:[%s3 + $0x4] sm:$0xf]
      %v652 = vld [vmem:[%s3 + $0x8] sm:$0xf]
      %v653 = vld [vmem:[%s3 + $0xc] sm:$0xf]
      %v654 = vld [vmem:[%s3 + $0x10] sm:$0xf]
      %v655 = vpack.c.bf16 %v620, %v618
      %v656 = vpack.c.bf16 %v621, %v619
      %v657 = vpack.c.bf16 %v624, %v622
      %v658 = vpack.c.bf16 %v625, %v623
      %v659 = vpack.c.bf16 %v628, %v626
      %v660 = vpack.c.bf16 %v629, %v627
      %v661 = vpack.c.bf16 %v632, %v630
      %v662 = vpack.c.bf16 %v633, %v631
      %v663 = vpack.c.bf16 %v636, %v634
      %v664 = vpack.c.bf16 %v637, %v635
      %v665 = vpack.c.bf16 %v640, %v638
      %v666 = vpack.c.bf16 %v641, %v639
      %v667 = vpack.c.bf16 %v644, %v642
      %v668 = vpack.c.bf16 %v645, %v643
      %v669 = vpack.c.bf16 %v648, %v646
      %v670 = vpack.c.bf16 %v649, %v647
      %v671 = vld [vmem:[%s4] sm:$0xff]
      %v672 = vld [vmem:[%s4 + $0x8] sm:$0xff]
      %v673 = vld [vmem:[%s4 + $0x10] sm:$0xff]
      %v674 = vld [vmem:[%s4 + $0x18] sm:$0xff]
      %v675 = vld [vmem:[%s4 + $0x20] sm:$0xff]
      %677 = vset.pattern.permute.xlu0 0
      %678 = vperm.xlu0 %677, %v671
      %v679 = vpop.permute.xlu0 %678
      %682 = vset.pattern.permute.xlu0 0
      %683 = vperm.xlu0 %682, %v672
      %v684 = vpop.permute.xlu0 %683
      %687 = vset.pattern.permute.xlu0 0
      %688 = vperm.xlu0 %687, %v673
      %v689 = vpop.permute.xlu0 %688
      %692 = vset.pattern.permute.xlu0 0
      %693 = vperm.xlu0 %692, %v674
      %v694 = vpop.permute.xlu0 %693
      %697 = vset.pattern.permute.xlu0 0
      %698 = vperm.xlu0 %697, %v675
      %v699 = vpop.permute.xlu0 %698
      %v706 = vunpack.c.l.b16 %v650
      %v707 = vunpack.c.l.b16 %v651
      %v708 = vunpack.c.l.b16 %v652
      %v709 = vunpack.c.l.b16 %v653
      %v710 = vunpack.c.l.b16 %v654
      %v711 = vpack.c.b16 %v707, %v706
      %v712 = vpack.c.b16 %v709, %v708
      %v713 = vpack.c.b16 %v710, %v710
      %717 = vmatpush.bf16.msra.mxu0 %v669
      %718 = vmatpush.bf16.msra.mxu0 %v667
      %719 = vmatpush.bf16.msra.mxu0 %v665
      %720 = vmatpush.bf16.msra.mxu0 %v663
      %721 = vmatpush.bf16.msra.mxu0 %v661
      %722 = vmatpush.bf16.msra.mxu0 %v659
      %723 = vmatpush.bf16.msra.mxu0 %v657
      %724 = vmatpush.bf16.msra.mxu0 %v655
      %725 = vmatmul.bf16.gmra.mxu0 %v711
      %v726 = vpop.f32.mrf.mxu0
      %v727 = vadd.f32 %v679, %v726
      %v728 = vpop.f32.mrf.mxu0
      %v729 = vadd.f32 %v684, %v728
      %730 = vmatmul.bf16.gmra.mxu0 %v712
      %v731 = vpop.f32.mrf.mxu0
      %v732 = vadd.f32 %v689, %v731
      %v733 = vpop.f32.mrf.mxu0
      %v734 = vadd.f32 %v694, %v733
      %735 = vmatmul.bf16.gmra.mxu0 %v713
      %v736 = vpop.f32.mrf.mxu0
      %v737 = vadd.f32 %v699, %v736
      %v738 = vpop.f32.mrf.mxu0
      %739 = vdwg.mxu0
      %740 = vmatpush.bf16.msra.mxu0 %v670
      %741 = vmatpush.bf16.msra.mxu0 %v668
      %742 = vmatpush.bf16.msra.mxu0 %v666
      %743 = vmatpush.bf16.msra.mxu0 %v664
      %744 = vmatpush.bf16.msra.mxu0 %v662
      %745 = vmatpush.bf16.msra.mxu0 %v660
      %746 = vmatpush.bf16.msra.mxu0 %v658
      %747 = vmatpush.bf16.msra.mxu0 %v656
      %748 = vmatmul.bf16.gmra.mxu0 %v711
      %v749 = vpop.f32.mrf.mxu0
      %v750 = vadd.f32 %v679, %v749
      %v751 = vpop.f32.mrf.mxu0
      %v752 = vadd.f32 %v684, %v751
      %753 = vmatmul.bf16.gmra.mxu0 %v712
      %v754 = vpop.f32.mrf.mxu0
      %v755 = vadd.f32 %v689, %v754
      %v756 = vpop.f32.mrf.mxu0
      %v757 = vadd.f32 %v694, %v756
      %758 = vmatmul.bf16.gmra.mxu0 %v713
      %v759 = vpop.f32.mrf.mxu0
      %v760 = vadd.f32 %v699, %v759
      %v761 = vpop.f32.mrf.mxu0
      %762 = vdwg.mxu0
      %763 = vxpose.xlu0.b32.start [1/16] %v727, 128
      %764 = vxpose.xlu0.b32.cont [2/16] %v729, 128
      %765 = vxpose.xlu0.b32.cont [3/16] %v732, 128
      %766 = vxpose.xlu0.b32.cont [4/16] %v734, 128
      %767 = vxpose.xlu0.b32.cont [5/16] %v737, 128
      %768 = vxpose.xlu0.b32.cont [6/16] 0.0, 128
      %769 = vxpose.xlu0.b32.cont [7/16] 0.0, 128
      %770 = vxpose.xlu0.b32.cont [8/16] 0.0, 128
      %771 = vxpose.xlu0.b32.cont [9/16] 0.0, 128
      %772 = vxpose.xlu0.b32.cont [10/16] 0.0, 128
      %773 = vxpose.xlu0.b32.cont [11/16] 0.0, 128
      %774 = vxpose.xlu0.b32.cont [12/16] 0.0, 128
      %775 = vxpose.xlu0.b32.cont [13/16] 0.0, 128
      %776 = vxpose.xlu0.b32.cont [14/16] 0.0, 128
      %777 = vxpose.xlu0.b32.cont [15/16] 0.0, 128
      %778 = vxpose.xlu0.b32.end [16/16] 0.0, 128
      %v779 = vpop.trf.xlu0
      %v780 = vpop.trf.xlu0
      %v781 = vpop.trf.xlu0
      %v782 = vpop.trf.xlu0
      %v783 = vpop.trf.xlu0
      %v784 = vpop.trf.xlu0
      %v785 = vpop.trf.xlu0
      %v786 = vpop.trf.xlu0
      %v787 = vpop.trf.xlu0
      %v788 = vpop.trf.xlu0
      %v789 = vpop.trf.xlu0
      %v790 = vpop.trf.xlu0
      %v791 = vpop.trf.xlu0
      %v792 = vpop.trf.xlu0
      %v793 = vpop.trf.xlu0
      %v794 = vpop.trf.xlu0
      %795 = vxpose.xlu0.b32.start [1/16] %v750, 128
      %796 = vxpose.xlu0.b32.cont [2/16] %v752, 128
      %797 = vxpose.xlu0.b32.cont [3/16] %v755, 128
      %798 = vxpose.xlu0.b32.cont [4/16] %v757, 128
      %799 = vxpose.xlu0.b32.cont [5/16] %v760, 128
      %800 = vxpose.xlu0.b32.cont [6/16] 0.0, 128
      %801 = vxpose.xlu0.b32.cont [7/16] 0.0, 128
      %802 = vxpose.xlu0.b32.cont [8/16] 0.0, 128
      %803 = vxpose.xlu0.b32.cont [9/16] 0.0, 128
      %804 = vxpose.xlu0.b32.cont [10/16] 0.0, 128
      %805 = vxpose.xlu0.b32.cont [11/16] 0.0, 128
      %806 = vxpose.xlu0.b32.cont [12/16] 0.0, 128
      %807 = vxpose.xlu0.b32.cont [13/16] 0.0, 128
      %808 = vxpose.xlu0.b32.cont [14/16] 0.0, 128
      %809 = vxpose.xlu0.b32.cont [15/16] 0.0, 128
      %810 = vxpose.xlu0.b32.end [16/16] 0.0, 128
      %v811 = vpop.trf.xlu0
      %v812 = vpop.trf.xlu0
      %v813 = vpop.trf.xlu0
      %v814 = vpop.trf.xlu0
      %v815 = vpop.trf.xlu0
      %v816 = vpop.trf.xlu0
      %v817 = vpop.trf.xlu0
      %v818 = vpop.trf.xlu0
      %v819 = vpop.trf.xlu0
      %v820 = vpop.trf.xlu0
      %v821 = vpop.trf.xlu0
      %v822 = vpop.trf.xlu0
      %v823 = vpop.trf.xlu0
      %v824 = vpop.trf.xlu0
      %v825 = vpop.trf.xlu0
      %v826 = vpop.trf.xlu0
      %v827 = vpack.c.bf16 %v779, %v779
      %v828 = vpack.c.bf16 %v780, %v780
      %v829 = vpack.c.bf16 %v781, %v781
      %v830 = vpack.c.bf16 %v782, %v782
      %v831 = vpack.c.bf16 %v783, %v783
      %v832 = vpack.c.bf16 %v784, %v784
      %v833 = vpack.c.bf16 %v785, %v785
      %v834 = vpack.c.bf16 %v786, %v786
      %v835 = vpack.c.bf16 %v787, %v787
      %v836 = vpack.c.bf16 %v788, %v788
      %v837 = vpack.c.bf16 %v789, %v789
      %v838 = vpack.c.bf16 %v790, %v790
      %v839 = vpack.c.bf16 %v791, %v791
      %v840 = vpack.c.bf16 %v792, %v792
      %v841 = vpack.c.bf16 %v793, %v793
      %v842 = vpack.c.bf16 %v794, %v794
      %v843 = vpack.c.bf16 %v811, %v811
      %v844 = vpack.c.bf16 %v812, %v812
      %v845 = vpack.c.bf16 %v813, %v813
      %v846 = vpack.c.bf16 %v814, %v814
      %v847 = vpack.c.bf16 %v815, %v815
      %v848 = vpack.c.bf16 %v816, %v816
      %v849 = vpack.c.bf16 %v817, %v817
      %v850 = vpack.c.bf16 %v818, %v818
      %v851 = vpack.c.bf16 %v819, %v819
      %v852 = vpack.c.bf16 %v820, %v820
      %v853 = vpack.c.bf16 %v821, %v821
      %v854 = vpack.c.bf16 %v822, %v822
      %v855 = vpack.c.bf16 %v823, %v823
      %v856 = vpack.c.bf16 %v824, %v824
      %v857 = vpack.c.bf16 %v825, %v825
      %v858 = vpack.c.bf16 %v826, %v826
      %vm859 = vcmask 240640
      %860 = vst.msk [vmem:[%s379] sm:$0xf] %vm859, %v827
      %861 = vst.msk [vmem:[%s379 + $0x4] sm:$0xf] %vm859, %v828
      %862 = vst.msk [vmem:[%s379 + $0x8] sm:$0xf] %vm859, %v829
      %863 = vst.msk [vmem:[%s379 + $0xc] sm:$0xf] %vm859, %v830
      %864 = vst.msk [vmem:[%s379 + $0x10] sm:$0xf] %vm859, %v831
      %865 = vst.msk [vmem:[%s379 + $0x14] sm:$0xf] %vm859, %v832
      %866 = vst.msk [vmem:[%s379 + $0x18] sm:$0xf] %vm859, %v833
      %867 = vst.msk [vmem:[%s379 + $0x1c] sm:$0xf] %vm859, %v834
      %868 = vst.msk [vmem:[%s379 + $0x20] sm:$0xf] %vm859, %v835
      %869 = vst.msk [vmem:[%s379 + $0x24] sm:$0xf] %vm859, %v836
      %870 = vst.msk [vmem:[%s379 + $0x28] sm:$0xf] %vm859, %v837
      %871 = vst.msk [vmem:[%s379 + $0x2c] sm:$0xf] %vm859, %v838
      %872 = vst.msk [vmem:[%s379 + $0x30] sm:$0xf] %vm859, %v839
      %873 = vst.msk [vmem:[%s379 + $0x34] sm:$0xf] %vm859, %v840
      %874 = vst.msk [vmem:[%s379 + $0x38] sm:$0xf] %vm859, %v841
      %875 = vst.msk [vmem:[%s379 + $0x3c] sm:$0xf] %vm859, %v842
      %876 = vst.msk [vmem:[%s379 + $0x40] sm:$0xf] %vm859, %v843
      %877 = vst.msk [vmem:[%s379 + $0x44] sm:$0xf] %vm859, %v844
      %878 = vst.msk [vmem:[%s379 + $0x48] sm:$0xf] %vm859, %v845
      %879 = vst.msk [vmem:[%s379 + $0x4c] sm:$0xf] %vm859, %v846
      %880 = vst.msk [vmem:[%s379 + $0x50] sm:$0xf] %vm859, %v847
      %881 = vst.msk [vmem:[%s379 + $0x54] sm:$0xf] %vm859, %v848
      %882 = vst.msk [vmem:[%s379 + $0x58] sm:$0xf] %vm859, %v849
      %883 = vst.msk [vmem:[%s379 + $0x5c] sm:$0xf] %vm859, %v850
      %884 = vst.msk [vmem:[%s379 + $0x60] sm:$0xf] %vm859, %v851
      %885 = vst.msk [vmem:[%s379 + $0x64] sm:$0xf] %vm859, %v852
      %886 = vst.msk [vmem:[%s379 + $0x68] sm:$0xf] %vm859, %v853
      %887 = vst.msk [vmem:[%s379 + $0x6c] sm:$0xf] %vm859, %v854
      %888 = vst.msk [vmem:[%s379 + $0x70] sm:$0xf] %vm859, %v855
      %889 = vst.msk [vmem:[%s379 + $0x74] sm:$0xf] %vm859, %v856
      %890 = vst.msk [vmem:[%s379 + $0x78] sm:$0xf] %vm859, %v857
      %891 = vst.msk [vmem:[%s379 + $0x7c] sm:$0xf] %vm859, %v858
      %924 = vrot.lane.b32.xlu0 %v827, 96
      %v925 = vpop.permute.xlu0 %924
      %926 = vrot.lane.b32.xlu0 %v828, 96
      %v927 = vpop.permute.xlu0 %926
      %928 = vrot.lane.b32.xlu0 %v829, 96
      %v929 = vpop.permute.xlu0 %928
      %930 = vrot.lane.b32.xlu0 %v830, 96
      %v931 = vpop.permute.xlu0 %930
      %932 = vrot.lane.b32.xlu0 %v831, 96
      %v933 = vpop.permute.xlu0 %932
      %934 = vrot.lane.b32.xlu0 %v832, 96
      %v935 = vpop.permute.xlu0 %934
      %936 = vrot.lane.b32.xlu0 %v833, 96
      %v937 = vpop.permute.xlu0 %936
      %938 = vrot.lane.b32.xlu0 %v834, 96
      %v939 = vpop.permute.xlu0 %938
      %940 = vrot.lane.b32.xlu0 %v835, 96
      %v941 = vpop.permute.xlu0 %940
      %942 = vrot.lane.b32.xlu0 %v836, 96
      %v943 = vpop.permute.xlu0 %942
      %944 = vrot.lane.b32.xlu0 %v837, 96
      %v945 = vpop.permute.xlu0 %944
      %946 = vrot.lane.b32.xlu0 %v838, 96
      %v947 = vpop.permute.xlu0 %946
      %948 = vrot.lane.b32.xlu0 %v839, 96
      %v949 = vpop.permute.xlu0 %948
      %950 = vrot.lane.b32.xlu0 %v840, 96
      %v951 = vpop.permute.xlu0 %950
      %952 = vrot.lane.b32.xlu0 %v841, 96
      %v953 = vpop.permute.xlu0 %952
      %954 = vrot.lane.b32.xlu0 %v842, 96
      %v955 = vpop.permute.xlu0 %954
      %956 = vrot.lane.b32.xlu0 %v843, 96
      %v957 = vpop.permute.xlu0 %956
      %958 = vrot.lane.b32.xlu0 %v844, 96
      %v959 = vpop.permute.xlu0 %958
      %960 = vrot.lane.b32.xlu0 %v845, 96
      %v961 = vpop.permute.xlu0 %960
      %962 = vrot.lane.b32.xlu0 %v846, 96
      %v963 = vpop.permute.xlu0 %962
      %964 = vrot.lane.b32.xlu0 %v847, 96
      %v965 = vpop.permute.xlu0 %964
      %966 = vrot.lane.b32.xlu0 %v848, 96
      %v967 = vpop.permute.xlu0 %966
      %968 = vrot.lane.b32.xlu0 %v849, 96
      %v969 = vpop.permute.xlu0 %968
      %970 = vrot.lane.b32.xlu0 %v850, 96
      %v971 = vpop.permute.xlu0 %970
      %972 = vrot.lane.b32.xlu0 %v851, 96
      %v973 = vpop.permute.xlu0 %972
      %974 = vrot.lane.b32.xlu0 %v852, 96
      %v975 = vpop.permute.xlu0 %974
      %976 = vrot.lane.b32.xlu0 %v853, 96
      %v977 = vpop.permute.xlu0 %976
      %978 = vrot.lane.b32.xlu0 %v854, 96
      %v979 = vpop.permute.xlu0 %978
      %980 = vrot.lane.b32.xlu0 %v855, 96
      %v981 = vpop.permute.xlu0 %980
      %982 = vrot.lane.b32.xlu0 %v856, 96
      %v983 = vpop.permute.xlu0 %982
      %984 = vrot.lane.b32.xlu0 %v857, 96
      %v985 = vpop.permute.xlu0 %984
      %986 = vrot.lane.b32.xlu0 %v858, 96
      %v987 = vpop.permute.xlu0 %986
      %vm1020 = vcmask 19456
      %1021 = vst.msk [vmem:[%s389] sm:$0xf] %vm1020, %v925
      %1022 = vst.msk [vmem:[%s389 + $0x4] sm:$0xf] %vm1020, %v927
      %1023 = vst.msk [vmem:[%s389 + $0x8] sm:$0xf] %vm1020, %v929
      %1024 = vst.msk [vmem:[%s389 + $0xc] sm:$0xf] %vm1020, %v931
      %1025 = vst.msk [vmem:[%s389 + $0x10] sm:$0xf] %vm1020, %v933
      %1026 = vst.msk [vmem:[%s389 + $0x14] sm:$0xf] %vm1020, %v935
      %1027 = vst.msk [vmem:[%s389 + $0x18] sm:$0xf] %vm1020, %v937
      %1028 = vst.msk [vmem:[%s389 + $0x1c] sm:$0xf] %vm1020, %v939
      %1029 = vst.msk [vmem:[%s389 + $0x20] sm:$0xf] %vm1020, %v941
      %1030 = vst.msk [vmem:[%s389 + $0x24] sm:$0xf] %vm1020, %v943
      %1031 = vst.msk [vmem:[%s389 + $0x28] sm:$0xf] %vm1020, %v945
      %1032 = vst.msk [vmem:[%s389 + $0x2c] sm:$0xf] %vm1020, %v947
      %1033 = vst.msk [vmem:[%s389 + $0x30] sm:$0xf] %vm1020, %v949
      %1034 = vst.msk [vmem:[%s389 + $0x34] sm:$0xf] %vm1020, %v951
      %1035 = vst.msk [vmem:[%s389 + $0x38] sm:$0xf] %vm1020, %v953
      %1036 = vst.msk [vmem:[%s389 + $0x3c] sm:$0xf] %vm1020, %v955
      %1037 = vst.msk [vmem:[%s389 + $0x40] sm:$0xf] %vm1020, %v957
      %1038 = vst.msk [vmem:[%s389 + $0x44] sm:$0xf] %vm1020, %v959
      %1039 = vst.msk [vmem:[%s389 + $0x48] sm:$0xf] %vm1020, %v961
      %1040 = vst.msk [vmem:[%s389 + $0x4c] sm:$0xf] %vm1020, %v963
      %1041 = vst.msk [vmem:[%s389 + $0x50] sm:$0xf] %vm1020, %v965
      %1042 = vst.msk [vmem:[%s389 + $0x54] sm:$0xf] %vm1020, %v967
      %1043 = vst.msk [vmem:[%s389 + $0x58] sm:$0xf] %vm1020, %v969
      %1044 = vst.msk [vmem:[%s389 + $0x5c] sm:$0xf] %vm1020, %v971
      %1045 = vst.msk [vmem:[%s389 + $0x60] sm:$0xf] %vm1020, %v973
      %1046 = vst.msk [vmem:[%s389 + $0x64] sm:$0xf] %vm1020, %v975
      %1047 = vst.msk [vmem:[%s389 + $0x68] sm:$0xf] %vm1020, %v977
      %1048 = vst.msk [vmem:[%s389 + $0x6c] sm:$0xf] %vm1020, %v979
      %1049 = vst.msk [vmem:[%s389 + $0x70] sm:$0xf] %vm1020, %v981
      %1050 = vst.msk [vmem:[%s389 + $0x74] sm:$0xf] %vm1020, %v983
      %1051 = vst.msk [vmem:[%s389 + $0x78] sm:$0xf] %vm1020, %v985
      %1052 = vst.msk [vmem:[%s389 + $0x7c] sm:$0xf] %vm1020, %v987
      %v1053 = vlaneseq
      %v1054 = vshrl.u32 %v1053, 7
      %vm1055 = vcmask 1042432
      %v1056 = vsel %vm1055, %v737, -inf
      %v1057 = vrot.slane %v1056, 4
      %v1058 = vmax.f32 %v1056, %v1057
      %v1059 = vrot.slane %v1058, 2
      %v1060 = vmax.f32 %v1058, %v1059
      %v1061 = vrot.slane %v1060, 1
      %v1062 = vmax.f32 %v1060, %v1061
      %v1063 = vsel %vm1055, %v760, -inf
      %v1064 = vrot.slane %v1063, 4
      %v1065 = vmax.f32 %v1063, %v1064
      %v1066 = vrot.slane %v1065, 2
      %v1067 = vmax.f32 %v1065, %v1066
      %v1068 = vrot.slane %v1067, 1
      %v1069 = vmax.f32 %v1067, %v1068
      %vm1070 = vcmp.ge.f32.partialorder %v737, %v1062
      %vm1071 = vcmp.ge.f32.partialorder %v760, %v1069
      %v1072 = vsel %vm1070, %v1054, 3
      %v1073 = vsel %vm1071, %v1054, 3
      %v1074 = vsel %vm1055, %v1072, 2147483647
      %v1075 = vrot.slane %v1074, 4
      %vm1076 = vcmp.lt.s32.totalorder %v1074, %v1075
      %v1077 = vsel %vm1076, %v1074, %v1075
      %v1078 = vrot.slane %v1077, 2
      %vm1079 = vcmp.lt.s32.totalorder %v1077, %v1078
      %v1080 = vsel %vm1079, %v1077, %v1078
      %v1081 = vrot.slane %v1080, 1
      %vm1082 = vcmp.lt.s32.totalorder %v1080, %v1081
      %v1083 = vsel %vm1082, %v1080, %v1081
      %v1084 = vsel %vm1055, %v1073, 2147483647
      %v1085 = vrot.slane %v1084, 4
      %vm1086 = vcmp.lt.s32.totalorder %v1084, %v1085
      %v1087 = vsel %vm1086, %v1084, %v1085
      %v1088 = vrot.slane %v1087, 2
      %vm1089 = vcmp.lt.s32.totalorder %v1087, %v1088
      %v1090 = vsel %vm1089, %v1087, %v1088
      %v1091 = vrot.slane %v1090, 1
      %vm1092 = vcmp.lt.s32.totalorder %v1090, %v1091
      %v1093 = vsel %vm1092, %v1090, %v1091
      %vm1094 = vcmp.eq.s32.totalorder %v1083, 0
      %vm1095 = vcmp.eq.s32.totalorder %v1093, 0
      %vm1096 = vcmp.eq.s32.totalorder %v1083, 1
      %vm1097 = vcmp.eq.s32.totalorder %v1093, 1
      %v1098 = vsel %vm1096, 0.8, 1.76
      %v1099 = vsel %vm1097, 0.8, 1.76
      %v1100 = vsel %vm1094, 3.9, %v1098
      %v1101 = vsel %vm1095, 3.9, %v1099
      %v1102 = vsel %vm1094, 1.6, 0.6
      %v1103 = vsel %vm1095, 1.6, 0.6
      %v1104 = vsel %vm1094, 1.56, 1.73
      %v1105 = vsel %vm1095, 1.56, 1.73
      %v1106 = vsel %vm1096, 1.0, 1.8594623
      %v1107 = vsel %vm1097, 1.0, 1.8594623
      %v1108 = vsel %vm1094, 4.215448, %v1106
      %v1109 = vsel %vm1095, 4.215448, %v1107
      %v1110 = vld [vmem:[%s369] sm:$0xff]
      %v1111 = vld [vmem:[%s369 + $0x8] sm:$0xff]
      %v1112 = vld [vmem:[%s369 + $0x10] sm:$0xff]
      %v1113 = vld [vmem:[%s369 + $0x18] sm:$0xff]
      %v1114 = vld [vmem:[%s369 + $0x20] sm:$0xff]
      %v1115 = vld [vmem:[%s369 + $0x28] sm:$0xff]
      %v1116 = vld [vmem:[%s369 + $0x30] sm:$0xff]
      %v1117 = vld [vmem:[%s369 + $0x38] sm:$0xff]
      %v1118 = vld [vmem:[%s369 + $0x40] sm:$0xff]
      %v1119 = vld [vmem:[%s369 + $0x48] sm:$0xff]
      %v1120 = vld [vmem:[%s369 + $0x50] sm:$0xff]
      %v1121 = vld [vmem:[%s369 + $0x58] sm:$0xff]
      %v1122 = vld [vmem:[%s369 + $0x60] sm:$0xff]
      %v1123 = vld [vmem:[%s369 + $0x68] sm:$0xff]
      %v1124 = vld [vmem:[%s369 + $0x70] sm:$0xff]
      %v1125 = vld [vmem:[%s369 + $0x78] sm:$0xff]
      %v1126 = vld [vmem:[%s369 + $0x80] sm:$0xff]
      %v1127 = vld [vmem:[%s369 + $0x88] sm:$0xff]
      %v1128 = vld [vmem:[%s369 + $0x90] sm:$0xff]
      %v1129 = vld [vmem:[%s369 + $0x98] sm:$0xff]
      %v1130 = vld [vmem:[%s369 + $0xa0] sm:$0xff]
      %v1131 = vld [vmem:[%s369 + $0xa8] sm:$0xff]
      %v1132 = vld [vmem:[%s369 + $0xb0] sm:$0xff]
      %v1133 = vld [vmem:[%s369 + $0xb8] sm:$0xff]
      %v1134 = vld [vmem:[%s369 + $0xc0] sm:$0xff]
      %v1135 = vld [vmem:[%s369 + $0xc8] sm:$0xff]
      %v1136 = vld [vmem:[%s369 + $0xd0] sm:$0xff]
      %v1137 = vld [vmem:[%s369 + $0xd8] sm:$0xff]
      %v1138 = vld [vmem:[%s369 + $0xe0] sm:$0xff]
      %v1139 = vld [vmem:[%s369 + $0xe8] sm:$0xff]
      %v1140 = vld [vmem:[%s369 + $0xf0] sm:$0xff]
      %v1141 = vld [vmem:[%s369 + $0xf8] sm:$0xff]
      %1142 = vxpose.xlu0.b32.start [1/16] %v1110, 128
      %1143 = vxpose.xlu0.b32.cont [2/16] %v1111, 128
      %1144 = vxpose.xlu0.b32.cont [3/16] %v1112, 128
      %1145 = vxpose.xlu0.b32.cont [4/16] %v1113, 128
      %1146 = vxpose.xlu0.b32.cont [5/16] %v1114, 128
      %1147 = vxpose.xlu0.b32.cont [6/16] %v1115, 128
      %1148 = vxpose.xlu0.b32.cont [7/16] %v1116, 128
      %1149 = vxpose.xlu0.b32.cont [8/16] %v1117, 128
      %1150 = vxpose.xlu0.b32.cont [9/16] %v1118, 128
      %1151 = vxpose.xlu0.b32.cont [10/16] %v1119, 128
      %1152 = vxpose.xlu0.b32.cont [11/16] %v1120, 128
      %1153 = vxpose.xlu0.b32.cont [12/16] %v1121, 128
      %1154 = vxpose.xlu0.b32.cont [13/16] %v1122, 128
      %1155 = vxpose.xlu0.b32.cont [14/16] %v1123, 128
      %1156 = vxpose.xlu0.b32.cont [15/16] %v1124, 128
      %1157 = vxpose.xlu0.b32.end [16/16] %v1125, 128
      %v1158 = vpop.trf.xlu0
      %v1159 = vpop.trf.xlu0
      %v1160 = vpop.trf.xlu0
      %v1161 = vpop.trf.xlu0
      %v1162 = vpop.trf.xlu0
      %v1163 = vpop.trf.xlu0
      %v1164 = vpop.trf.xlu0
      %v1165 = vpop.trf.xlu0
      %v1166 = vpop.trf.xlu0
      %v1167 = vpop.trf.xlu0
      %v1168 = vpop.trf.xlu0
      %v1169 = vpop.trf.xlu0
      %v1170 = vpop.trf.xlu0
      %v1171 = vpop.trf.xlu0
      %v1172 = vpop.trf.xlu0
      %v1173 = vpop.trf.xlu0
      %1174 = vxpose.xlu0.b32.start [1/16] %v1126, 128
      %1175 = vxpose.xlu0.b32.cont [2/16] %v1127, 128
      %1176 = vxpose.xlu0.b32.cont [3/16] %v1128, 128
      %1177 = vxpose.xlu0.b32.cont [4/16] %v1129, 128
      %1178 = vxpose.xlu0.b32.cont [5/16] %v1130, 128
      %1179 = vxpose.xlu0.b32.cont [6/16] %v1131, 128
      %1180 = vxpose.xlu0.b32.cont [7/16] %v1132, 128
      %1181 = vxpose.xlu0.b32.cont [8/16] %v1133, 128
      %1182 = vxpose.xlu0.b32.cont [9/16] %v1134, 128
      %1183 = vxpose.xlu0.b32.cont [10/16] %v1135, 128
      %1184 = vxpose.xlu0.b32.cont [11/16] %v1136, 128
      %1185 = vxpose.xlu0.b32.cont [12/16] %v1137, 128
      %1186 = vxpose.xlu0.b32.cont [13/16] %v1138, 128
      %1187 = vxpose.xlu0.b32.cont [14/16] %v1139, 128
      %1188 = vxpose.xlu0.b32.cont [15/16] %v1140, 128
      %1189 = vxpose.xlu0.b32.end [16/16] %v1141, 128
      %v1190 = vpop.trf.xlu0
      %v1191 = vpop.trf.xlu0
      %v1192 = vpop.trf.xlu0
      %v1193 = vpop.trf.xlu0
      %v1194 = vpop.trf.xlu0
      %v1195 = vpop.trf.xlu0
      %v1196 = vpop.trf.xlu0
      %v1197 = vpop.trf.xlu0
      %v1198 = vpop.trf.xlu0
      %v1199 = vpop.trf.xlu0
      %v1200 = vpop.trf.xlu0
      %v1201 = vpop.trf.xlu0
      %v1202 = vpop.trf.xlu0
      %v1203 = vpop.trf.xlu0
      %v1204 = vpop.trf.xlu0
      %v1205 = vpop.trf.xlu0
      %vm1206 = vcmp.eq.s32.totalorder %v1054, 2
      %v1207 = vsel %vm1206, %v1104, %v1108
      %v1208 = vsel %vm1206, %v1105, %v1109
      %vm1209 = vcmp.eq.s32.totalorder %v1054, 0
      %vm1210 = vcmp.eq.s32.totalorder %v1054, 1
      %v1211 = vsel %vm1210, %v1102, %v1104
      %v1212 = vsel %vm1210, %v1103, %v1105
      %v1213 = vsel %vm1209, %v1100, %v1211
      %v1214 = vsel %vm1209, %v1101, %v1212
      %v1215 = vmul.f32 %v727, %v1207
      %v1216 = vmul.f32 %v750, %v1208
      %v1217 = vadd.f32 %v1215, %v1158
      %v1218 = vadd.f32 %v1216, %v1190
      %v1219 = vmul.f32 %v727, 1.442695
      %v1220 = vpow.pop %v1219
      %v1221 = vmul.f32 %v750, 1.442695
      %v1222 = vpow.pop %v1221
      %v1225 = vrot.slane %v1213, 5
      %v1226 = vrot.slane %v1214, 5
      %v1229 = vmul.f32 %v1220, %v1225
      %v1230 = vmul.f32 %v1222, %v1226
      %v1231 = vadd.s32 %v1054, 8
      %vm1232 = vcmask 1047558
      %v1233 = vsel %vm1232, %v727, -inf
      %vm1234 = vcmask 1041408
      %v1235 = vsel %vm1234, %v732, -inf
      %v1236 = vmax.f32 %v1233, %v1235
      %v1237 = vmax.f32 %v1236, %v729
      %v1238 = vrot.slane %v1237, 4
      %v1239 = vmax.f32 %v1237, %v1238
      %v1240 = vrot.slane %v1239, 2
      %v1241 = vmax.f32 %v1239, %v1240
      %v1242 = vrot.slane %v1241, 1
      %v1243 = vmax.f32 %v1241, %v1242
      %v1244 = vsel %vm1232, %v750, -inf
      %v1245 = vsel %vm1234, %v755, -inf
      %v1246 = vmax.f32 %v1244, %v1245
      %v1247 = vmax.f32 %v1246, %v752
      %v1248 = vrot.slane %v1247, 4
      %v1249 = vmax.f32 %v1247, %v1248
      %v1250 = vrot.slane %v1249, 2
      %v1251 = vmax.f32 %v1249, %v1250
      %v1252 = vrot.slane %v1251, 1
      %v1253 = vmax.f32 %v1251, %v1252
      %vm1254 = vcmp.ge.f32.partialorder %v727, %v1243
      %vm1255 = vcmp.ge.f32.partialorder %v750, %v1253
      %vm1256 = vcmp.ge.f32.partialorder %v729, %v1243
      %vm1257 = vcmp.ge.f32.partialorder %v752, %v1253
      %vm1258 = vcmp.ge.f32.partialorder %v732, %v1243
      %vm1259 = vcmp.ge.f32.partialorder %v755, %v1253
      %vm1260 = vcmask 1045504
      %v1261 = vrot.slane %v1054, 2
      %v1262 = vrot.slane %v1231, 2
      %v1263 = vsel %vm1260, %v1261, %v1262
      %v1264 = vsel %vm1254, %v1261, 12
      %v1265 = vsel %vm1255, %v1261, 12
      %v1266 = vsel %vm1256, %v1263, 12
      %v1267 = vsel %vm1257, %v1263, 12
      %v1268 = vsel %vm1258, %v1262, 12
      %v1269 = vsel %vm1259, %v1262, 12
      %v1270 = vsel %vm1232, %v1264, 2147483647
      %v1271 = vsel %vm1234, %v1268, 2147483647
      %vm1272 = vcmp.lt.s32.totalorder %v1270, %v1271
      %v1273 = vsel %vm1272, %v1270, %v1271
      %vm1274 = vcmp.lt.s32.totalorder %v1273, %v1266
      %v1275 = vsel %vm1274, %v1273, %v1266
      %v1276 = vrot.slane %v1275, 4
      %vm1277 = vcmp.lt.s32.totalorder %v1275, %v1276
      %v1278 = vsel %vm1277, %v1275, %v1276
      %v1279 = vrot.slane %v1278, 2
      %vm1280 = vcmp.lt.s32.totalorder %v1278, %v1279
      %v1281 = vsel %vm1280, %v1278, %v1279
      %v1282 = vrot.slane %v1281, 1
      %vm1283 = vcmp.lt.s32.totalorder %v1281, %v1282
      %v1284 = vsel %vm1283, %v1281, %v1282
      %v1285 = vsel %vm1232, %v1265, 2147483647
      %v1286 = vsel %vm1234, %v1269, 2147483647
      %vm1287 = vcmp.lt.s32.totalorder %v1285, %v1286
      %v1288 = vsel %vm1287, %v1285, %v1286
      %vm1289 = vcmp.lt.s32.totalorder %v1288, %v1267
      %v1290 = vsel %vm1289, %v1288, %v1267
      %v1291 = vrot.slane %v1290, 4
      %vm1292 = vcmp.lt.s32.totalorder %v1290, %v1291
      %v1293 = vsel %vm1292, %v1290, %v1291
      %v1294 = vrot.slane %v1293, 2
      %vm1295 = vcmp.lt.s32.totalorder %v1293, %v1294
      %v1296 = vsel %vm1295, %v1293, %v1294
      %v1297 = vrot.slane %v1296, 1
      %vm1298 = vcmp.lt.s32.totalorder %v1296, %v1297
      %v1299 = vsel %vm1298, %v1296, %v1297
      %vm1300 = vcmp.eq.s32.totalorder %v1054, %v1284
      %vm1301 = vcmp.eq.s32.totalorder %v1054, %v1299
      %vm1302 = vcmp.eq.s32.totalorder %v1231, %v1284
      %vm1303 = vcmp.eq.s32.totalorder %v1231, %v1299
      %v1308 = vrot.slane %v732, 2
      %v1309 = vrot.slane %v734, 2
      %v1310 = vsel %vm1260, %v1308, %v1309
      %v1311 = vrot.slane %v755, 2
      %v1312 = vrot.slane %v757, 2
      %v1313 = vsel %vm1260, %v1311, %v1312
      %v1318 = vsel %vm1300, %v1310, 0.0
      %v1319 = vsel %vm1301, %v1313, 0.0
      %v1320 = vsel %vm1302, %v1309, 0.0
      %v1321 = vsel %vm1303, %v1312, 0.0
      %v1322 = vsel %vm516, %v1320, 0.0
      %v1323 = vadd.f32 %v1318, %v1322
      %v1324 = vrot.slane %v1323, 4
      %v1325 = vadd.f32 %v1323, %v1324
      %v1326 = vrot.slane %v1325, 2
      %v1327 = vadd.f32 %v1325, %v1326
      %v1328 = vrot.slane %v1327, 1
      %v1329 = vadd.f32 %v1327, %v1328
      %v1330 = vsel %vm516, %v1321, 0.0
      %v1331 = vadd.f32 %v1319, %v1330
      %v1332 = vrot.slane %v1331, 4
      %v1333 = vadd.f32 %v1331, %v1332
      %v1334 = vrot.slane %v1333, 2
      %v1335 = vadd.f32 %v1333, %v1334
      %v1336 = vrot.slane %v1335, 1
      %v1337 = vadd.f32 %v1335, %v1336
      %v1338 = vcvt.s32.f32 %v1284
      %v1339 = vcvt.s32.f32 %v1299
      %v1340 = vmul.f32 %v1338, 0.5235988
      %v1341 = vmul.f32 %v1339, 0.5235988
      %v1342 = vadd.f32 %v1340, %v1329
      %v1343 = vadd.f32 %v1341, %v1337
      %v1344 = vsub.f32 %v1342, 3.1415927
      %v1345 = vsub.f32 %v1343, 3.1415927
      %v1346 = vsel %vm1055, %v1217, %v1229
      %v1347 = vsel %vm1055, %v1218, %v1230
      %v1348 = vsel %vm1260, %v1346, %v1344
      %v1349 = vsel %vm1260, %v1347, %v1345
      %vm1350 = vcmask 1046528
      %v1351 = vsel %vm1350, %v1348, 0.0
      %v1352 = vsel %vm1350, %v1349, 0.0
      %1353 = vxpose.xlu0.b32.start [1/16] %v1351, 128
      %1354 = vxpose.xlu0.b32.cont [2/16] 0.0, 128
      %1355 = vxpose.xlu0.b32.cont [3/16] 0.0, 128
      %1356 = vxpose.xlu0.b32.cont [4/16] 0.0, 128
      %1357 = vxpose.xlu0.b32.cont [5/16] 0.0, 128
      %1358 = vxpose.xlu0.b32.cont [6/16] 0.0, 128
      %1359 = vxpose.xlu0.b32.cont [7/16] 0.0, 128
      %1360 = vxpose.xlu0.b32.cont [8/16] 0.0, 128
      %1361 = vxpose.xlu0.b32.cont [9/16] 0.0, 128
      %1362 = vxpose.xlu0.b32.cont [10/16] 0.0, 128
      %1363 = vxpose.xlu0.b32.cont [11/16] 0.0, 128
      %1364 = vxpose.xlu0.b32.cont [12/16] 0.0, 128
      %1365 = vxpose.xlu0.b32.cont [13/16] 0.0, 128
      %1366 = vxpose.xlu0.b32.cont [14/16] 0.0, 128
      %1367 = vxpose.xlu0.b32.cont [15/16] 0.0, 128
      %1368 = vxpose.xlu0.b32.end [16/16] 0.0, 128
      %v1369 = vpop.trf.xlu0
      %v1370 = vpop.trf.xlu0
      %v1371 = vpop.trf.xlu0
      %v1372 = vpop.trf.xlu0
      %v1373 = vpop.trf.xlu0
      %v1374 = vpop.trf.xlu0
      %v1375 = vpop.trf.xlu0
      %v1376 = vpop.trf.xlu0
      %v1377 = vpop.trf.xlu0
      %v1378 = vpop.trf.xlu0
      %v1379 = vpop.trf.xlu0
      %v1380 = vpop.trf.xlu0
      %v1381 = vpop.trf.xlu0
      %v1382 = vpop.trf.xlu0
      %v1383 = vpop.trf.xlu0
      %v1384 = vpop.trf.xlu0
      %1385 = vxpose.xlu0.b32.start [1/16] %v1352, 128
      %1386 = vxpose.xlu0.b32.cont [2/16] 0.0, 128
      %1387 = vxpose.xlu0.b32.cont [3/16] 0.0, 128
      %1388 = vxpose.xlu0.b32.cont [4/16] 0.0, 128
      %1389 = vxpose.xlu0.b32.cont [5/16] 0.0, 128
      %1390 = vxpose.xlu0.b32.cont [6/16] 0.0, 128
      %1391 = vxpose.xlu0.b32.cont [7/16] 0.0, 128
      %1392 = vxpose.xlu0.b32.cont [8/16] 0.0, 128
      %1393 = vxpose.xlu0.b32.cont [9/16] 0.0, 128
      %1394 = vxpose.xlu0.b32.cont [10/16] 0.0, 128
      %1395 = vxpose.xlu0.b32.cont [11/16] 0.0, 128
      %1396 = vxpose.xlu0.b32.cont [12/16] 0.0, 128
      %1397 = vxpose.xlu0.b32.cont [13/16] 0.0, 128
      %1398 = vxpose.xlu0.b32.cont [14/16] 0.0, 128
      %1399 = vxpose.xlu0.b32.cont [15/16] 0.0, 128
      %1400 = vxpose.xlu0.b32.end [16/16] 0.0, 128
      %v1401 = vpop.trf.xlu0
      %v1402 = vpop.trf.xlu0
      %v1403 = vpop.trf.xlu0
      %v1404 = vpop.trf.xlu0
      %v1405 = vpop.trf.xlu0
      %v1406 = vpop.trf.xlu0
      %v1407 = vpop.trf.xlu0
      %v1408 = vpop.trf.xlu0
      %v1409 = vpop.trf.xlu0
      %v1410 = vpop.trf.xlu0
      %v1411 = vpop.trf.xlu0
      %v1412 = vpop.trf.xlu0
      %v1413 = vpop.trf.xlu0
      %v1414 = vpop.trf.xlu0
      %v1415 = vpop.trf.xlu0
      %v1416 = vpop.trf.xlu0
      %vm1417 = vcmask 56320
      %1418 = vst.msk [vmem:[%s399] sm:$0xff] %vm1417, %v1369
      %1419 = vst.msk [vmem:[%s399 + $0x8] sm:$0xff] %vm1417, %v1370
      %1420 = vst.msk [vmem:[%s399 + $0x10] sm:$0xff] %vm1417, %v1371
      %1421 = vst.msk [vmem:[%s399 + $0x18] sm:$0xff] %vm1417, %v1372
      %1422 = vst.msk [vmem:[%s399 + $0x20] sm:$0xff] %vm1417, %v1373
      %1423 = vst.msk [vmem:[%s399 + $0x28] sm:$0xff] %vm1417, %v1374
      %1424 = vst.msk [vmem:[%s399 + $0x30] sm:$0xff] %vm1417, %v1375
      %1425 = vst.msk [vmem:[%s399 + $0x38] sm:$0xff] %vm1417, %v1376
      %1426 = vst.msk [vmem:[%s399 + $0x40] sm:$0xff] %vm1417, %v1377
      %1427 = vst.msk [vmem:[%s399 + $0x48] sm:$0xff] %vm1417, %v1378
      %1428 = vst.msk [vmem:[%s399 + $0x50] sm:$0xff] %vm1417, %v1379
      %1429 = vst.msk [vmem:[%s399 + $0x58] sm:$0xff] %vm1417, %v1380
      %1430 = vst.msk [vmem:[%s399 + $0x60] sm:$0xff] %vm1417, %v1381
      %1431 = vst.msk [vmem:[%s399 + $0x68] sm:$0xff] %vm1417, %v1382
      %1432 = vst.msk [vmem:[%s399 + $0x70] sm:$0xff] %vm1417, %v1383
      %1433 = vst.msk [vmem:[%s399 + $0x78] sm:$0xff] %vm1417, %v1384
      %1434 = vst.msk [vmem:[%s399 + $0x80] sm:$0xff] %vm1417, %v1401
      %1435 = vst.msk [vmem:[%s399 + $0x88] sm:$0xff] %vm1417, %v1402
      %1436 = vst.msk [vmem:[%s399 + $0x90] sm:$0xff] %vm1417, %v1403
      %1437 = vst.msk [vmem:[%s399 + $0x98] sm:$0xff] %vm1417, %v1404
      %1438 = vst.msk [vmem:[%s399 + $0xa0] sm:$0xff] %vm1417, %v1405
      %1439 = vst.msk [vmem:[%s399 + $0xa8] sm:$0xff] %vm1417, %v1406
      %1440 = vst.msk [vmem:[%s399 + $0xb0] sm:$0xff] %vm1417, %v1407
      %1441 = vst.msk [vmem:[%s399 + $0xb8] sm:$0xff] %vm1417, %v1408
      %1442 = vst.msk [vmem:[%s399 + $0xc0] sm:$0xff] %vm1417, %v1409
      %1443 = vst.msk [vmem:[%s399 + $0xc8] sm:$0xff] %vm1417, %v1410
      %1444 = vst.msk [vmem:[%s399 + $0xd0] sm:$0xff] %vm1417, %v1411
      %1445 = vst.msk [vmem:[%s399 + $0xd8] sm:$0xff] %vm1417, %v1412
      %1446 = vst.msk [vmem:[%s399 + $0xe0] sm:$0xff] %vm1417, %v1413
      %1447 = vst.msk [vmem:[%s399 + $0xe8] sm:$0xff] %vm1417, %v1414
      %1448 = vst.msk [vmem:[%s399 + $0xf0] sm:$0xff] %vm1417, %v1415
      %1449 = vst.msk [vmem:[%s399 + $0xf8] sm:$0xff] %vm1417, %v1416
      %s1450 = smul.u32 32, %s24
      %p1451 = scmp.lt.s32.totalorder %s23, 1
      %s1452 = scalar_select %p1451, %s23, 1
      %p1453 = scmp.lt.s32.totalorder %s1450, 31
      %s1454 = scalar_select %p1453, %s1450, 31
      %s1455 = smul.addr %s1452, 32
      %s1456 = sadd.s32 %s1454, %s1455
      %s1457 = smul.addr %s1456, 4
      %s1458 = scalar_lea.vmem %s5, %s1457
      %s1459 = smul.u32 32, %s24
      %p1460 = scmp.lt.s32.totalorder %s23, 1
      %s1461 = scalar_select %p1460, %s23, 1
      %p1462 = scmp.lt.s32.totalorder %s1459, 31
      %s1463 = scalar_select %p1462, %s1459, 31
      %s1464 = smul.addr %s1461, 32
      %s1465 = sadd.s32 %s1463, %s1464
      %s1466 = smul.addr %s1465, 4
      %s1467 = scalar_lea.vmem %s6, %s1466
      %s1468 = smul.u32 32, %s24
      %p1469 = scmp.lt.s32.totalorder %s23, 1
      %s1470 = scalar_select %p1469, %s23, 1
      %p1471 = scmp.lt.s32.totalorder %s1468, 31
      %s1472 = scalar_select %p1471, %s1468, 31
      %s1473 = smul.addr %s1470, 32
      %s1474 = sadd.s32 %s1472, %s1473
      %s1475 = smul.addr %s1474, 8
      %s1476 = scalar_lea.vmem %s7, %s1475
      // Predicated region
      $region41: #{iassd_head_forward.1} parent=39 // pred_check
        %p1477 = pneg %p170
      $region42: #{iassd_head_forward.1} parent=39 // pred_check_branch
        %1479 = sbr.rel (%p1477) target = $region44
      $region43: #{iassd_head_forward.1} parent=39 // pred_region
        %s1480 = smul.u32 32, %s24
      $region44: #{iassd_head_forward.1} parent=39 // pred_fallthru
        _
      // Predicated region
      $region45: #{iassd_head_forward.1} parent=39 // pred_check
        %p1481 = pneg %p198
      $region46: #{iassd_head_forward.1} parent=39 // pred_check_branch
        %1483 = sbr.rel (%p1481) target = $region48
      $region47: #{iassd_head_forward.1} parent=39 // pred_region
        %s1484 = smul.u32 32, %s24
      $region48: #{iassd_head_forward.1} parent=39 // pred_fallthru
        _
      // Predicated region
      $region49: #{iassd_head_forward.1} parent=39 // pred_check
        %p1485 = pneg %p226
      $region50: #{iassd_head_forward.1} parent=39 // pred_check_branch
        %1487 = sbr.rel (%p1485) target = $region52
      $region51: #{iassd_head_forward.1} parent=39 // pred_region
        %s1488 = smul.u32 32, %s24
      $region52: #{iassd_head_forward.1} parent=39 // pred_fallthru
        _
    $region40: #{iassd_head_forward.1} parent=5 // pred_fallthru
      _
    %p1489 = scmp.le.s32.totalorder 2, %s14
    // Predicated region
    $region53: #{iassd_head_forward.1} parent=5 // pred_check
      %p1490 = pneg %p1489
    $region54: #{iassd_head_forward.1} parent=5 // pred_check_branch
      %1492 = sbr.rel (%p1490) target = $region56
    $region55: #{iassd_head_forward.1} parent=5 // pred_region
      %s1493 = ssub.s32 %s14, 2
      // Predicated region
      $region57: #{iassd_head_forward.1} parent=55 // pred_check
        %p1494 = pneg %p176
      $region58: #{iassd_head_forward.1} parent=55 // pred_check_branch
        %1496 = sbr.rel (%p1494) target = $region60
      $region59: #{iassd_head_forward.1} parent=55 // pred_region
        %s1497 = smul.u32 32, %s26
        %p1498 = scmp.lt.s32.totalorder %s25, 1
        %s1499 = scalar_select %p1498, %s25, 1
        %p1500 = scmp.lt.s32.totalorder %s1497, 31
        %s1501 = scalar_select %p1500, %s1497, 31
        %s1502 = smul.addr %s1499, 32
        %s1503 = sadd.s32 %s1501, %s1502
        %s1504 = smul.addr %s1503, 4
        %s1505 = scalar_lea.vmem %s5, %s1504
      $region60: #{iassd_head_forward.1} parent=55 // pred_fallthru
        _
      // Predicated region
      $region61: #{iassd_head_forward.1} parent=55 // pred_check
        %p1506 = pneg %p204
      $region62: #{iassd_head_forward.1} parent=55 // pred_check_branch
        %1508 = sbr.rel (%p1506) target = $region64
      $region63: #{iassd_head_forward.1} parent=55 // pred_region
        %s1509 = smul.u32 32, %s26
        %p1510 = scmp.lt.s32.totalorder %s25, 1
        %s1511 = scalar_select %p1510, %s25, 1
        %p1512 = scmp.lt.s32.totalorder %s1509, 31
        %s1513 = scalar_select %p1512, %s1509, 31
        %s1514 = smul.addr %s1511, 32
        %s1515 = sadd.s32 %s1513, %s1514
        %s1516 = smul.addr %s1515, 4
        %s1517 = scalar_lea.vmem %s6, %s1516
      $region64: #{iassd_head_forward.1} parent=55 // pred_fallthru
        _
      // Predicated region
      $region65: #{iassd_head_forward.1} parent=55 // pred_check
        %p1518 = pneg %p232
      $region66: #{iassd_head_forward.1} parent=55 // pred_check_branch
        %1520 = sbr.rel (%p1518) target = $region68
      $region67: #{iassd_head_forward.1} parent=55 // pred_region
        %s1521 = smul.u32 32, %s26
        %p1522 = scmp.lt.s32.totalorder %s25, 1
        %s1523 = scalar_select %p1522, %s25, 1
        %p1524 = scmp.lt.s32.totalorder %s1521, 31
        %s1525 = scalar_select %p1524, %s1521, 31
        %s1526 = smul.addr %s1523, 32
        %s1527 = sadd.s32 %s1525, %s1526
        %s1528 = smul.addr %s1527, 8
        %s1529 = scalar_lea.vmem %s7, %s1528
      $region68: #{iassd_head_forward.1} parent=55 // pred_fallthru
        _
    $region56: #{iassd_head_forward.1} parent=5 // pred_fallthru
      _
  $region6: #{iassd_head_forward.1} parent=0 // loop_footer
    %s18 = sadd.s32 1, %s14
  $region7: #{iassd_head_forward.1} parent=0 // loop_footer_branch
    %13 = sbr.rel target = $region3
  $region8: #{iassd_head_forward.1} parent=0 // loop_exit
    _

</llo_original>
